<compile_context>
chip_gen: v7x
topology: tpu7x:2x2x1
jax: 0.10.0
libtpu: 0.0.40
codegen_flags: <defaults>
</compile_context>

<pallas_src>
import jax
import jax.numpy as jnp
from jax.experimental import pallas as pl

# ----------------------------- config ---------------------------------------
B = 2            # batch
N = 16           # sequence length
C = 32           # embedding dim
NUM_HEADS = 4
HEAD_DIM = C // NUM_HEADS
MLP_HIDDEN = int(C * 4.0)        # 128
EPS = 1e-5
SCALE = HEAD_DIM ** (-0.5)
GELU_APPROXIMATE = True          # tanh GELU on the EUP (perf review); False = exact erf


def _layernorm(x, w, b):
    mean = jnp.mean(x, axis=-1, keepdims=True)
    var = jnp.mean((x - mean) ** 2, axis=-1, keepdims=True)
    return (x - mean) * jax.lax.rsqrt(var + EPS) * w + b


# ----------------------------- kernel ---------------------------------------
def block_kernel(x_ref,        # (B*N, C)  fused activation rows
                 wqkv_ref,     # (C, 3C)   Wqkv.T, SCALE folded into Q columns
                 wproj_ref,    # (H, D, C) Wproj.T per head
                 wmlp_ref,     # (2, C, HID): [Wfc1.T, Wfc2]
                 small_ref,    # (8, 128)  packed LN weights + biases
                 o_ref):       # (B*N, C)
    H, D = NUM_HEADS, HEAD_DIM
    BN = B * N

    # ---- packed small params (single DMA, single (8,128) tile) ----
    ln1_w = small_ref[0:1, 0:C]
    ln1_b = small_ref[1:2, 0:C]
    ln2_w = small_ref[2:3, 0:C]
    ln2_b = small_ref[3:4, 0:C]
    bproj = small_ref[4:5, 0:C]
    bfc2  = small_ref[5:6, 0:C]
    bfc1  = small_ref[6:7, :]                    # (1, HID)

    x2 = x_ref[...]                              # (BN, C)

    # ---- LayerNorm 1 over the fused batch ----
    xn = _layernorm(x2, ln1_w, ln1_b)            # (BN, C)

    # ---- ONE lane-dense QKV matmul: (32,32) @ (32,96) ----
    qkv2 = jnp.dot(xn, wqkv_ref[...], preferred_element_type=jnp.float32)  # (BN, 3C)

    # Carve per-head q/k/v: static 8-lane slices -> (B,N,D) -> stack over heads ->
    # (H*B, N, D).  Only lane slices, sublane splits and major-dim stacks/merges
    # (no lane-dim reshape).  z = h*B + b.
    def carve(base):
        per_head = [
            qkv2[:, base + h * D: base + (h + 1) * D].reshape(B, N, D)
            for h in range(H)
        ]
        return jnp.stack(per_head, axis=0).reshape(H * B, N, D)

    q = carve(0)            # SCALE already folded into these weight columns
    k = carve(C)
    v = carve(2 * C)

    # ---- attention: all heads & batches in one batched einsum each ----
    s = jnp.einsum('zqd,zkd->zqk', q, k, preferred_element_type=jnp.float32)   # (HB,N,N)
    s = s - jnp.max(s, axis=-1, keepdims=True)
    p = jnp.exp(s)
    p = p * pl.reciprocal(jnp.sum(p, axis=-1, keepdims=True), approx=True)
    o = jnp.einsum('zqk,zkd->zqd', p, v, preferred_element_type=jnp.float32)   # (HB,N,D)

    # ---- output projection: head concat folded into a batched matmul + sum over h ----
    oh = o.reshape(H, BN, D)                                       # rows = b*N + n
    ph = jnp.einsum('hnd,hdc->hnc', oh, wproj_ref[...],
                    preferred_element_type=jnp.float32)            # (H, BN, C)
    x1 = x2 + ph.sum(axis=0) + bproj                               # (BN, C)

    # ---- LayerNorm 2 + MLP (fc1 -> GELU -> fc2) + residual ----
    x2n = _layernorm(x1, ln2_w, ln2_b)
    w1 = wmlp_ref[0]                                               # (C, HID) = Wfc1.T
    w2 = wmlp_ref[1]                                               # (C, HID) = Wfc2
    h1 = jnp.dot(x2n, w1, preferred_element_type=jnp.float32) + bfc1    # (BN, HID)
    h1 = jax.nn.gelu(h1, approximate=GELU_APPROXIMATE)
    # y = h1 @ Wfc2.T via trans-B dot_general ('nk,ck->nc', same pattern as q@k.T)
    y = jax.lax.dot_general(h1, w2, (((1,), (1,)), ((), ())),
                            preferred_element_type=jnp.float32) + bfc2  # (BN, C)

    o_ref[...] = (x1 + y).astype(o_ref.dtype)


# ----------------------------- wrapper ---------------------------------------
def block_forward(x, params):
    (ln1_w, ln1_b, wqkv_t, wproj_t, bproj,
     ln2_w, ln2_b, wfc1_t, bfc1, wfc2_t, bfc2) = params

    # One-time parameter-layout preprocessing (outside the kernel, free):
    #  * softmax scale folded into the Q columns of Wqkv.T (exact),
    #  * Wproj.T reshaped per head so the head concat folds into the projection,
    #  * MLP weights stacked into one slab (fc2 stored transposed for trans-B dot),
    #  * eight small (1,C)/(1,HID) params packed into one (8,128) slab (one DMA).
    wqkv = jnp.concatenate([wqkv_t[:, :C] * SCALE, wqkv_t[:, C:]], axis=1)   # (C, 3C)
    wproj_heads = wproj_t.reshape(NUM_HEADS, HEAD_DIM, C)                    # (H, D, C)
    wmlp = jnp.stack([wfc1_t, wfc2_t.T], axis=0)                             # (2, C, HID)

    small = jnp.zeros((8, MLP_HIDDEN), jnp.float32)
    small = small.at[0, :C].set(ln1_w[0])
    small = small.at[1, :C].set(ln1_b[0])
    small = small.at[2, :C].set(ln2_w[0])
    small = small.at[3, :C].set(ln2_b[0])
    small = small.at[4, :C].set(bproj[0])
    small = small.at[5, :C].set(bfc2[0])
    small = small.at[6, :].set(bfc1[0])

    # Single kernel invocation: no grid, all 5 operands as whole-array VMEM blocks.
    out2 = pl.pallas_call(
        block_kernel,
        out_shape=jax.ShapeDtypeStruct((B * N, C), x.dtype),
    )(x.reshape(B * N, C), wqkv, wproj_heads, wmlp, small)
    return out2.reshape(B, N, C)


# ----------------------------- reference (pure JAX, torch semantics) ----------
def block_ref(x, params):
    (ln1_w, ln1_b, wqkv_t, wproj_t, bproj,
     ln2_w, ln2_b, wfc1_t, bfc1, wfc2_t, bfc2) = params

    def ln(z, w, b):
        m = jnp.mean(z, -1, keepdims=True)
        v = jnp.mean((z - m) ** 2, -1, keepdims=True)
        return (z - m) / jnp.sqrt(v + EPS) * w + b

    xn = ln(x, ln1_w[0], ln1_b[0])
    qkv = xn @ wqkv_t                                        # (B, N, 3C)
    qkv = qkv.reshape(B, N, 3, NUM_HEADS, HEAD_DIM).transpose(2, 0, 3, 1, 4)
    q, k, v = qkv[0] * SCALE, qkv[1], qkv[2]                 # (B, H, N, D)
    attn = jax.nn.softmax(q @ k.transpose(0, 1, 3, 2), axis=-1)
    o = (attn @ v).transpose(0, 2, 1, 3).reshape(B, N, C)
    x1 = x + (o @ wproj_t + bproj[0])
    x2n = ln(x1, ln2_w[0], ln2_b[0])
    h = jax.nn.gelu(x2n @ wfc1_t + bfc1[0], approximate=False)   # torch.nn.GELU default
    return x1 + (h @ wfc2_t + bfc2[0])


# ----------------------------- main ------------------------------------------
if __name__ == "__main__":
    key = jax.random.PRNGKey(0)
    keys = jax.random.split(key, 8)

    x = jax.random.normal(keys[0], (B, N, C), dtype=jnp.float32)

    # Deterministic synthetic parameters (shapes follow the PyTorch module;
    # dropout / drop_path are identity at p=0.0).
    ln1_w = jnp.ones((1, C), jnp.float32)
    ln1_b = jnp.zeros((1, C), jnp.float32)
    ln2_w = jnp.ones((1, C), jnp.float32)
    ln2_b = jnp.zeros((1, C), jnp.float32)
    wqkv_t = 0.05 * jax.random.normal(keys[1], (C, 3 * C), jnp.float32)   # = Wqkv.T
    wproj_t = 0.05 * jax.random.normal(keys[2], (C, C), jnp.float32)      # = Wproj.T
    bproj = 0.05 * jax.random.normal(keys[3], (1, C), jnp.float32)
    wfc1_t = 0.05 * jax.random.normal(keys[4], (C, MLP_HIDDEN), jnp.float32)
    bfc1 = 0.05 * jax.random.normal(keys[5], (1, MLP_HIDDEN), jnp.float32)
    wfc2_t = 0.05 * jax.random.normal(keys[6], (MLP_HIDDEN, C), jnp.float32)
    bfc2 = 0.05 * jax.random.normal(keys[7], (1, C), jnp.float32)

    params = (ln1_w, ln1_b, wqkv_t, wproj_t, bproj,
              ln2_w, ln2_b, wfc1_t, bfc1, wfc2_t, bfc2)

    out = block_forward(x, params)
    out = jax.block_until_ready(out)

    ref = block_ref(x, params)
    assert out.shape == (B, N, C)
    # Tolerance covers the EUP approximate reciprocal in softmax and the tanh-GELU
    # approximation (both contribute << 1e-3 at these magnitudes).
    assert jnp.allclose(out, ref, atol=2e-3, rtol=2e-3), "mismatch vs reference"

    print("KERNEL_OK")
</pallas_src>

<mosaic_0001>
module attributes {stable_mosaic.version = 11 : i64} {
  func.func @block_kernel(%arg0: memref<32x32xf32, #tpu.memory_space<vmem>>, %arg1: memref<32x96xf32, #tpu.memory_space<vmem>>, %arg2: memref<4x8x32xf32, #tpu.memory_space<vmem>>, %arg3: memref<2x32x128xf32, #tpu.memory_space<vmem>>, %arg4: memref<8x128xf32, #tpu.memory_space<vmem>>, %arg5: memref<32x32xf32, #tpu.memory_space<vmem>>) attributes {dimension_semantics = [], scalar_prefetch = 0 : i64, scratch_operands = 0 : i64, tpu.core_type = #tpu.core_type<tc>} {
    %c0 = arith.constant 0 : index
    %c0_0 = arith.constant 0 : index
    %0 = vector.load %arg4[%c0, %c0_0] : memref<8x128xf32, #tpu.memory_space<vmem>>, vector<1x32xf32>
    %c1 = arith.constant 1 : index
    %c0_1 = arith.constant 0 : index
    %1 = vector.load %arg4[%c1, %c0_1] : memref<8x128xf32, #tpu.memory_space<vmem>>, vector<1x32xf32>
    %c2 = arith.constant 2 : index
    %c0_2 = arith.constant 0 : index
    %2 = vector.load %arg4[%c2, %c0_2] : memref<8x128xf32, #tpu.memory_space<vmem>>, vector<1x32xf32>
    %c3 = arith.constant 3 : index
    %c0_3 = arith.constant 0 : index
    %3 = vector.load %arg4[%c3, %c0_3] : memref<8x128xf32, #tpu.memory_space<vmem>>, vector<1x32xf32>
    %c4 = arith.constant 4 : index
    %c0_4 = arith.constant 0 : index
    %4 = vector.load %arg4[%c4, %c0_4] : memref<8x128xf32, #tpu.memory_space<vmem>>, vector<1x32xf32>
    %c5 = arith.constant 5 : index
    %c0_5 = arith.constant 0 : index
    %5 = vector.load %arg4[%c5, %c0_5] : memref<8x128xf32, #tpu.memory_space<vmem>>, vector<1x32xf32>
    %c6 = arith.constant 6 : index
    %c0_6 = arith.constant 0 : index
    %6 = vector.load %arg4[%c6, %c0_6] : memref<8x128xf32, #tpu.memory_space<vmem>>, vector<1x128xf32>
    %c0_7 = arith.constant 0 : index
    %c0_8 = arith.constant 0 : index
    %7 = vector.load %arg0[%c0_7, %c0_8] : memref<32x32xf32, #tpu.memory_space<vmem>>, vector<32x32xf32>
    %cst = arith.constant dense<0.000000e+00> : vector<32xf32>
    %8 = vector.multi_reduction <add>, %7, %cst [1] : vector<32x32xf32> to vector<32xf32>
    %9 = vector.shape_cast %8 : vector<32xf32> to vector<32x1xf32>
    %cst_9 = arith.constant 3.200000e+01 : f32
    %10 = vector.broadcast %cst_9 : f32 to vector<32x1xf32>
    %11 = arith.divf %9, %10 : vector<32x1xf32>
    %12 = vector.broadcast %11 : vector<32x1xf32> to vector<32x32xf32>
    %13 = arith.subf %7, %12 : vector<32x32xf32>
    %14 = arith.mulf %13, %13 : vector<32x32xf32>
    %cst_10 = arith.constant dense<0.000000e+00> : vector<32xf32>
    %15 = vector.multi_reduction <add>, %14, %cst_10 [1] : vector<32x32xf32> to vector<32xf32>
    %16 = vector.shape_cast %15 : vector<32xf32> to vector<32x1xf32>
    %cst_11 = arith.constant 3.200000e+01 : f32
    %17 = vector.broadcast %cst_11 : f32 to vector<32x1xf32>
    %18 = arith.divf %16, %17 : vector<32x1xf32>
    %19 = vector.broadcast %11 : vector<32x1xf32> to vector<32x32xf32>
    %20 = arith.subf %7, %19 : vector<32x32xf32>
    %cst_12 = arith.constant 9.99999974E-6 : f32
    %21 = vector.broadcast %cst_12 : f32 to vector<32x1xf32>
    %22 = arith.addf %18, %21 : vector<32x1xf32>
    %23 = math.rsqrt %22 : vector<32x1xf32>
    %24 = vector.broadcast %23 : vector<32x1xf32> to vector<32x32xf32>
    %25 = arith.mulf %20, %24 : vector<32x32xf32>
    %26 = vector.broadcast %0 : vector<1x32xf32> to vector<32x32xf32>
    %27 = arith.mulf %25, %26 : vector<32x32xf32>
    %28 = vector.broadcast %1 : vector<1x32xf32> to vector<32x32xf32>
    %29 = arith.addf %27, %28 : vector<32x32xf32>
    %c0_13 = arith.constant 0 : index
    %c0_14 = arith.constant 0 : index
    %30 = vector.load %arg1[%c0_13, %c0_14] : memref<32x96xf32, #tpu.memory_space<vmem>>, vector<32x96xf32>
    %cst_15 = arith.constant dense<0.000000e+00> : vector<32x96xf32>
    %31 = tpu.matmul %29, %30, %cst_15 {dimension_numbers = #tpu.dot_dimension_numbers<[1], [0], [0], [1], [0, 0, 1, 1], [], []>} : vector<32x32xf32>, vector<32x96xf32>, vector<32x96xf32> -> vector<32x96xf32>
    %32 = vector.extract_strided_slice %31 {offsets = [0, 0], sizes = [32, 8], strides = [1, 1]} : vector<32x96xf32> to vector<32x8xf32>
    %33 = vector.shape_cast %32 : vector<32x8xf32> to vector<2x16x8xf32>
    %34 = vector.extract_strided_slice %31 {offsets = [0, 8], sizes = [32, 8], strides = [1, 1]} : vector<32x96xf32> to vector<32x8xf32>
    %35 = vector.shape_cast %34 : vector<32x8xf32> to vector<2x16x8xf32>
    %36 = vector.extract_strided_slice %31 {offsets = [0, 16], sizes = [32, 8], strides = [1, 1]} : vector<32x96xf32> to vector<32x8xf32>
    %37 = vector.shape_cast %36 : vector<32x8xf32> to vector<2x16x8xf32>
    %38 = vector.extract_strided_slice %31 {offsets = [0, 24], sizes = [32, 8], strides = [1, 1]} : vector<32x96xf32> to vector<32x8xf32>
    %39 = vector.shape_cast %38 : vector<32x8xf32> to vector<2x16x8xf32>
    %40 = vector.shape_cast %33 : vector<2x16x8xf32> to vector<1x2x16x8xf32>
    %41 = vector.shape_cast %35 : vector<2x16x8xf32> to vector<1x2x16x8xf32>
    %42 = vector.shape_cast %37 : vector<2x16x8xf32> to vector<1x2x16x8xf32>
    %43 = vector.shape_cast %39 : vector<2x16x8xf32> to vector<1x2x16x8xf32>
    %44 = tpu.concatenate %40, %41, %42, %43 in 0 : vector<1x2x16x8xf32>, vector<1x2x16x8xf32>, vector<1x2x16x8xf32>, vector<1x2x16x8xf32> -> vector<4x2x16x8xf32>
    %45 = vector.shape_cast %44 : vector<4x2x16x8xf32> to vector<8x16x8xf32>
    %46 = vector.extract_strided_slice %31 {offsets = [0, 32], sizes = [32, 8], strides = [1, 1]} : vector<32x96xf32> to vector<32x8xf32>
    %47 = vector.shape_cast %46 : vector<32x8xf32> to vector<2x16x8xf32>
    %48 = vector.extract_strided_slice %31 {offsets = [0, 40], sizes = [32, 8], strides = [1, 1]} : vector<32x96xf32> to vector<32x8xf32>
    %49 = vector.shape_cast %48 : vector<32x8xf32> to vector<2x16x8xf32>
    %50 = vector.extract_strided_slice %31 {offsets = [0, 48], sizes = [32, 8], strides = [1, 1]} : vector<32x96xf32> to vector<32x8xf32>
    %51 = vector.shape_cast %50 : vector<32x8xf32> to vector<2x16x8xf32>
    %52 = vector.extract_strided_slice %31 {offsets = [0, 56], sizes = [32, 8], strides = [1, 1]} : vector<32x96xf32> to vector<32x8xf32>
    %53 = vector.shape_cast %52 : vector<32x8xf32> to vector<2x16x8xf32>
    %54 = vector.shape_cast %47 : vector<2x16x8xf32> to vector<1x2x16x8xf32>
    %55 = vector.shape_cast %49 : vector<2x16x8xf32> to vector<1x2x16x8xf32>
    %56 = vector.shape_cast %51 : vector<2x16x8xf32> to vector<1x2x16x8xf32>
    %57 = vector.shape_cast %53 : vector<2x16x8xf32> to vector<1x2x16x8xf32>
    %58 = tpu.concatenate %54, %55, %56, %57 in 0 : vector<1x2x16x8xf32>, vector<1x2x16x8xf32>, vector<1x2x16x8xf32>, vector<1x2x16x8xf32> -> vector<4x2x16x8xf32>
    %59 = vector.shape_cast %58 : vector<4x2x16x8xf32> to vector<8x16x8xf32>
    %60 = vector.extract_strided_slice %31 {offsets = [0, 64], sizes = [32, 8], strides = [1, 1]} : vector<32x96xf32> to vector<32x8xf32>
    %61 = vector.shape_cast %60 : vector<32x8xf32> to vector<2x16x8xf32>
    %62 = vector.extract_strided_slice %31 {offsets = [0, 72], sizes = [32, 8], strides = [1, 1]} : vector<32x96xf32> to vector<32x8xf32>
    %63 = vector.shape_cast %62 : vector<32x8xf32> to vector<2x16x8xf32>
    %64 = vector.extract_strided_slice %31 {offsets = [0, 80], sizes = [32, 8], strides = [1, 1]} : vector<32x96xf32> to vector<32x8xf32>
    %65 = vector.shape_cast %64 : vector<32x8xf32> to vector<2x16x8xf32>
    %66 = vector.extract_strided_slice %31 {offsets = [0, 88], sizes = [32, 8], strides = [1, 1]} : vector<32x96xf32> to vector<32x8xf32>
    %67 = vector.shape_cast %66 : vector<32x8xf32> to vector<2x16x8xf32>
    %68 = vector.shape_cast %61 : vector<2x16x8xf32> to vector<1x2x16x8xf32>
    %69 = vector.shape_cast %63 : vector<2x16x8xf32> to vector<1x2x16x8xf32>
    %70 = vector.shape_cast %65 : vector<2x16x8xf32> to vector<1x2x16x8xf32>
    %71 = vector.shape_cast %67 : vector<2x16x8xf32> to vector<1x2x16x8xf32>
    %72 = tpu.concatenate %68, %69, %70, %71 in 0 : vector<1x2x16x8xf32>, vector<1x2x16x8xf32>, vector<1x2x16x8xf32>, vector<1x2x16x8xf32> -> vector<4x2x16x8xf32>
    %73 = vector.shape_cast %72 : vector<4x2x16x8xf32> to vector<8x16x8xf32>
    "tpu.trace_start"() <{level = 10 : i32, message = "zqd,zkd->zqk"}> : () -> ()
    %cst_16 = arith.constant dense<0.000000e+00> : vector<8x16x16xf32>
    %74 = tpu.matmul %45, %59, %cst_16 {dimension_numbers = #tpu.dot_dimension_numbers<[2], [2], [1], [1], [0, 0, 0, 1, 1, 1], [0], [0]>} : vector<8x16x8xf32>, vector<8x16x8xf32>, vector<8x16x16xf32> -> vector<8x16x16xf32>
    "tpu.trace_stop"() : () -> ()
    %cst_17 = arith.constant dense<0xFF800000> : vector<8x16xf32>
    %75 = vector.multi_reduction <maximumf>, %74, %cst_17 [2] : vector<8x16x16xf32> to vector<8x16xf32>
    %76 = vector.shape_cast %75 : vector<8x16xf32> to vector<8x16x1xf32>
    %77 = vector.broadcast %76 : vector<8x16x1xf32> to vector<8x16x16xf32>
    %78 = arith.subf %74, %77 : vector<8x16x16xf32>
    %79 = math.exp %78 : vector<8x16x16xf32>
    %cst_18 = arith.constant dense<0.000000e+00> : vector<8x16xf32>
    %80 = vector.multi_reduction <add>, %79, %cst_18 [2] : vector<8x16x16xf32> to vector<8x16xf32>
    %81 = vector.shape_cast %80 : vector<8x16xf32> to vector<8x16x1xf32>
    %82 = tpu.reciprocal %81 {approx = true} : vector<8x16x1xf32> -> vector<8x16x1xf32>
    %83 = vector.broadcast %82 : vector<8x16x1xf32> to vector<8x16x16xf32>
    %84 = arith.mulf %79, %83 : vector<8x16x16xf32>
    "tpu.trace_start"() <{level = 10 : i32, message = "zqk,zkd->zqd"}> : () -> ()
    %cst_19 = arith.constant dense<0.000000e+00> : vector<8x16x8xf32>
    %85 = tpu.matmul %84, %73, %cst_19 {dimension_numbers = #tpu.dot_dimension_numbers<[2], [1], [1], [2], [0, 0, 0, 1, 1, 2], [0], [0]>} : vector<8x16x16xf32>, vector<8x16x8xf32>, vector<8x16x8xf32> -> vector<8x16x8xf32>
    "tpu.trace_stop"() : () -> ()
    %86 = vector.shape_cast %85 : vector<8x16x8xf32> to vector<4x32x8xf32>
    %c0_20 = arith.constant 0 : index
    %c0_21 = arith.constant 0 : index
    %c0_22 = arith.constant 0 : index
    %87 = vector.load %arg2[%c0_20, %c0_21, %c0_22] : memref<4x8x32xf32, #tpu.memory_space<vmem>>, vector<4x8x32xf32>
    "tpu.trace_start"() <{level = 10 : i32, message = "hnd,hdc->hnc"}> : () -> ()
    %cst_23 = arith.constant dense<0.000000e+00> : vector<4x32x32xf32>
    %88 = tpu.matmul %86, %87, %cst_23 {dimension_numbers = #tpu.dot_dimension_numbers<[2], [1], [1], [2], [0, 0, 0, 1, 1, 2], [0], [0]>} : vector<4x32x8xf32>, vector<4x8x32xf32>, vector<4x32x32xf32> -> vector<4x32x32xf32>
    "tpu.trace_stop"() : () -> ()
    %cst_24 = arith.constant dense<0.000000e+00> : vector<32x32xf32>
    %89 = vector.multi_reduction <add>, %88, %cst_24 [0] : vector<4x32x32xf32> to vector<32x32xf32>
    %90 = arith.addf %7, %89 : vector<32x32xf32>
    %91 = vector.broadcast %4 : vector<1x32xf32> to vector<32x32xf32>
    %92 = arith.addf %90, %91 : vector<32x32xf32>
    %cst_25 = arith.constant dense<0.000000e+00> : vector<32xf32>
    %93 = vector.multi_reduction <add>, %92, %cst_25 [1] : vector<32x32xf32> to vector<32xf32>
    %94 = vector.shape_cast %93 : vector<32xf32> to vector<32x1xf32>
    %cst_26 = arith.constant 3.200000e+01 : f32
    %95 = vector.broadcast %cst_26 : f32 to vector<32x1xf32>
    %96 = arith.divf %94, %95 : vector<32x1xf32>
    %97 = vector.broadcast %96 : vector<32x1xf32> to vector<32x32xf32>
    %98 = arith.subf %92, %97 : vector<32x32xf32>
    %99 = arith.mulf %98, %98 : vector<32x32xf32>
    %cst_27 = arith.constant dense<0.000000e+00> : vector<32xf32>
    %100 = vector.multi_reduction <add>, %99, %cst_27 [1] : vector<32x32xf32> to vector<32xf32>
    %101 = vector.shape_cast %100 : vector<32xf32> to vector<32x1xf32>
    %cst_28 = arith.constant 3.200000e+01 : f32
    %102 = vector.broadcast %cst_28 : f32 to vector<32x1xf32>
    %103 = arith.divf %101, %102 : vector<32x1xf32>
    %104 = vector.broadcast %96 : vector<32x1xf32> to vector<32x32xf32>
    %105 = arith.subf %92, %104 : vector<32x32xf32>
    %cst_29 = arith.constant 9.99999974E-6 : f32
    %106 = vector.broadcast %cst_29 : f32 to vector<32x1xf32>
    %107 = arith.addf %103, %106 : vector<32x1xf32>
    %108 = math.rsqrt %107 : vector<32x1xf32>
    %109 = vector.broadcast %108 : vector<32x1xf32> to vector<32x32xf32>
    %110 = arith.mulf %105, %109 : vector<32x32xf32>
    %111 = vector.broadcast %2 : vector<1x32xf32> to vector<32x32xf32>
    %112 = arith.mulf %110, %111 : vector<32x32xf32>
    %113 = vector.broadcast %3 : vector<1x32xf32> to vector<32x32xf32>
    %114 = arith.addf %112, %113 : vector<32x32xf32>
    %c0_30 = arith.constant 0 : index
    %c0_31 = arith.constant 0 : index
    %c0_32 = arith.constant 0 : index
    %115 = vector.load %arg3[%c0_30, %c0_31, %c0_32] : memref<2x32x128xf32, #tpu.memory_space<vmem>>, vector<1x32x128xf32>
    %116 = vector.shape_cast %115 : vector<1x32x128xf32> to vector<32x128xf32>
    %c1_33 = arith.constant 1 : index
    %c0_34 = arith.constant 0 : index
    %c0_35 = arith.constant 0 : index
    %117 = vector.load %arg3[%c1_33, %c0_34, %c0_35] : memref<2x32x128xf32, #tpu.memory_space<vmem>>, vector<1x32x128xf32>
    %118 = vector.shape_cast %117 : vector<1x32x128xf32> to vector<32x128xf32>
    %cst_36 = arith.constant dense<0.000000e+00> : vector<32x128xf32>
    %119 = tpu.matmul %114, %116, %cst_36 {dimension_numbers = #tpu.dot_dimension_numbers<[1], [0], [0], [1], [0, 0, 1, 1], [], []>} : vector<32x32xf32>, vector<32x128xf32>, vector<32x128xf32> -> vector<32x128xf32>
    %120 = vector.broadcast %6 : vector<1x128xf32> to vector<32x128xf32>
    %121 = arith.addf %119, %120 : vector<32x128xf32>
    %122 = arith.mulf %121, %121 : vector<32x128xf32>
    %123 = arith.mulf %121, %122 : vector<32x128xf32>
    %cst_37 = arith.constant 4.471500e-02 : f32
    %124 = vector.broadcast %cst_37 : f32 to vector<32x128xf32>
    %125 = arith.mulf %124, %123 : vector<32x128xf32>
    %126 = arith.addf %121, %125 : vector<32x128xf32>
    %cst_38 = arith.constant 0.797884583 : f32
    %127 = vector.broadcast %cst_38 : f32 to vector<32x128xf32>
    %128 = arith.mulf %127, %126 : vector<32x128xf32>
    %129 = math.tanh %128 : vector<32x128xf32>
    %cst_39 = arith.constant 1.000000e+00 : f32
    %130 = vector.broadcast %cst_39 : f32 to vector<32x128xf32>
    %131 = arith.addf %130, %129 : vector<32x128xf32>
    %cst_40 = arith.constant 5.000000e-01 : f32
    %132 = vector.broadcast %cst_40 : f32 to vector<32x128xf32>
    %133 = arith.mulf %132, %131 : vector<32x128xf32>
    %134 = arith.mulf %121, %133 : vector<32x128xf32>
    %cst_41 = arith.constant dense<0.000000e+00> : vector<32x32xf32>
    %135 = tpu.matmul %134, %118, %cst_41 {dimension_numbers = #tpu.dot_dimension_numbers<[1], [1], [0], [0], [0, 0, 1, 0], [], []>} : vector<32x128xf32>, vector<32x128xf32>, vector<32x32xf32> -> vector<32x32xf32>
    %136 = vector.broadcast %5 : vector<1x32xf32> to vector<32x32xf32>
    %137 = arith.addf %135, %136 : vector<32x32xf32>
    %138 = arith.addf %92, %137 : vector<32x32xf32>
    %c0_42 = arith.constant 0 : index
    %c0_43 = arith.constant 0 : index
    %139 = vector.load %arg5[%c0_42, %c0_43] : memref<32x32xf32, #tpu.memory_space<vmem>>, vector<32x32xf32>
    tpu.vector_store %arg5[%c0_42, %c0_43], %138 {strides = array<i32>} : memref<32x32xf32, #tpu.memory_space<vmem>>, vector<32x32xf32>,
    return
  }
}

</mosaic_0001>

<llo_original>
// kernel: tpu_custom_call.1
$region0: #{tpu_custom_call.1}
  #allocation0 [shape = 'u32[]', space=smem, size = 0x4, offset = 0x4, fixed_abs, tag = 'smem constant byte address 0x4 - core index']
  #allocation1 [shape = 'u32[144,128]{1,0:T(1,128)}', space=vmem, size = 0x12000, scoped, tag = 'internal scratch']
  %s0 = inlined_call_operand.hbm [shape: f32[32,32], index: 0, kind: input, shape index: {}]
  %s1 = inlined_call_operand.hbm [shape: f32[32,96], index: 1, kind: input, shape index: {}]
  %s2 = inlined_call_operand.hbm [shape: f32[4,8,32], index: 2, kind: input, shape index: {}]
  %s3 = inlined_call_operand.hbm [shape: f32[2,32,128], index: 3, kind: input, shape index: {}]
  %s4 = inlined_call_operand.vmem [shape: f32[8,128], index: 4, kind: input, shape index: {}]
  %s5 = inlined_call_operand.hbm [shape: f32[32,32], index: 5, kind: output, shape index: {}]
  %s6 = sld [smem:[#allocation0]]
  $region46: #{tpu_custom_call.1} parent=0
    _
  %s8 = ssub.s32 1, %s6
  %s9 = scalar_select 0, %s8, %s6
  $region1: #{tpu_custom_call.1} parent=0
    #allocation2 [shape = 'u8[16384]{0}', space=vmem, size = 0x4000, scoped, tag = 'input window, operand 0, single buffered']
    #allocation3 [shape = 's32[1]{0}', space=sflag, size = 0x4, scoped, tag = 'scoped memory for tpu_custom_call.1']
    #allocation4 [shape = 's32[1]{0}', space=sflag, size = 0x4, scoped, tag = 'scoped memory for tpu_custom_call.1']
    #allocation5 [shape = 'u8[16384]{0}', space=vmem, size = 0x4000, scoped, tag = 'input window, operand 1, single buffered']
    #allocation6 [shape = 's32[1]{0}', space=sflag, size = 0x4, scoped, tag = 'scoped memory for tpu_custom_call.1']
    #allocation7 [shape = 'u8[16384]{0}', space=vmem, size = 0x4000, scoped, tag = 'input window, operand 2, single buffered']
    #allocation8 [shape = 'u8[32768]{0}', space=vmem, size = 0x8000, scoped, tag = 'input window, operand 3, single buffered']
    #allocation9 [shape = 's32[1]{0}', space=sflag, size = 0x4, scoped, tag = 'scoped memory for tpu_custom_call.1']
    #allocation10 [shape = 'u8[16384]{0}', space=vmem, size = 0x4000, scoped, tag = 'output window, operand 0, single buffered']
    %10 = vsyncpa [#allocation3], 0
    %11 = vsyncpa [#allocation6], 0
    %12 = vsyncpa [#allocation9], 0
    %13 = vsyncpa [#allocation4], 0
    // Predicated region
    $region2: #{tpu_custom_call.1} parent=1 // pred_check
      _
    $region3: #{tpu_custom_call.1} parent=1 // pred_check_branch
      %15 = sbr.rel (0) target = $region5
    $region4: #{tpu_custom_call.1} parent=1 // pred_region
      %s17 = ssub.s32 512, 512
      %18 = vsyncadd [#allocation3], %s17
      %s19 = sshll.u32 [#allocation2], 4
      %s20 = int_to_ptr.vmem [resolvable:$true] %s19
      %25 = dma.hbm_to_vmem [thread:$0]  %s0, 512, %s20, [#allocation3], 128, 128, 8
    $region5: #{tpu_custom_call.1} parent=1 // pred_fallthru
      _
    // Predicated region
    $region6: #{tpu_custom_call.1} parent=1 // pred_check
      _
    $region7: #{tpu_custom_call.1} parent=1 // pred_check_branch
      %27 = sbr.rel (0) target = $region9
    $region8: #{tpu_custom_call.1} parent=1 // pred_region
      %s29 = ssub.s32 512, 512
      %30 = vsyncadd [#allocation6], %s29
      %s31 = sshll.u32 [#allocation5], 4
      %s32 = int_to_ptr.vmem [resolvable:$true] %s31
      %37 = dma.hbm_to_vmem [thread:$0]  %s1, 512, %s32, [#allocation6], 128, 128, 8
    $region9: #{tpu_custom_call.1} parent=1 // pred_fallthru
      _
    // Predicated region
    $region10: #{tpu_custom_call.1} parent=1 // pred_check
      _
    $region11: #{tpu_custom_call.1} parent=1 // pred_check_branch
      %39 = sbr.rel (0) target = $region13
    $region12: #{tpu_custom_call.1} parent=1 // pred_region
      %s41 = ssub.s32 512, 512
      %42 = vsyncadd [#allocation6], %s41
      %s43 = sshll.u32 [#allocation7], 4
      %s44 = int_to_ptr.vmem [resolvable:$true] %s43
      %49 = dma.hbm_to_vmem [thread:$0]  %s2, 512, %s44, [#allocation6], 128, 128, 8
    $region13: #{tpu_custom_call.1} parent=1 // pred_fallthru
      _
    // Predicated region
    $region14: #{tpu_custom_call.1} parent=1 // pred_check
      _
    $region15: #{tpu_custom_call.1} parent=1 // pred_check_branch
      %51 = sbr.rel (0) target = $region17
    $region16: #{tpu_custom_call.1} parent=1 // pred_region
      %s53 = ssub.s32 1024, 1024
      %54 = vsyncadd [#allocation9], %s53
      %s55 = sshll.u32 [#allocation8], 4
      %s56 = int_to_ptr.vmem [resolvable:$true] %s55
      %61 = dma.hbm_to_vmem [thread:$0]  %s3, 1024, %s56, [#allocation9], 128, 128, 8
    $region17: #{tpu_custom_call.1} parent=1 // pred_fallthru
      _
    // Predicated region
    $region18: #{tpu_custom_call.1} parent=1 // pred_check
      _
    $region19: #{tpu_custom_call.1} parent=1 // pred_check_branch
      %63 = sbr.rel (0) target = $region21
    $region20: #{tpu_custom_call.1} parent=1 // pred_region
      _
    $region21: #{tpu_custom_call.1} parent=1 // pred_fallthru
      _
    // Predicated region
    $region22: #{tpu_custom_call.1} parent=1 // pred_check
      _
    $region23: #{tpu_custom_call.1} parent=1 // pred_check_branch
      %65 = sbr.rel (0) target = $region25
    $region24: #{tpu_custom_call.1} parent=1 // pred_region
      %66 = dma.done [#allocation3], 512
    $region25: #{tpu_custom_call.1} parent=1 // pred_fallthru
      _
    // Predicated region
    $region26: #{tpu_custom_call.1} parent=1 // pred_check
      _
    $region27: #{tpu_custom_call.1} parent=1 // pred_check_branch
      %68 = sbr.rel (0) target = $region29
    $region28: #{tpu_custom_call.1} parent=1 // pred_region
      %69 = dma.done [#allocation6], 512
    $region29: #{tpu_custom_call.1} parent=1 // pred_fallthru
      _
    // Predicated region
    $region30: #{tpu_custom_call.1} parent=1 // pred_check
      _
    $region31: #{tpu_custom_call.1} parent=1 // pred_check_branch
      %71 = sbr.rel (0) target = $region33
    $region32: #{tpu_custom_call.1} parent=1 // pred_region
      %72 = dma.done [#allocation6], 512
    $region33: #{tpu_custom_call.1} parent=1 // pred_fallthru
      _
    // Predicated region
    $region34: #{tpu_custom_call.1} parent=1 // pred_check
      _
    $region35: #{tpu_custom_call.1} parent=1 // pred_check_branch
      %74 = sbr.rel (0) target = $region37
    $region36: #{tpu_custom_call.1} parent=1 // pred_region
      %75 = dma.done [#allocation9], 1024
    $region37: #{tpu_custom_call.1} parent=1 // pred_fallthru
      _
    %v76 = vld [vmem:[%s4] sm:$0x1]
    %v77 = vld [vmem:[%s4 + $0x1] sm:$0x1]
    %v78 = vld [vmem:[%s4 + $0x2] sm:$0x1]
    %v79 = vld [vmem:[%s4 + $0x3] sm:$0x1]
    %v80 = vld [vmem:[%s4 + $0x4] sm:$0x1]
    %v81 = vld [vmem:[%s4 + $0x5] sm:$0x1]
    %v82 = vld [vmem:[%s4 + $0x6] sm:$0x1]
    %v83 = vld [vmem:[#allocation2] sm:$0xff]
    %v84 = vld [vmem:[#allocation2 + $0x8] sm:$0xff]
    %v85 = vld [vmem:[#allocation2 + $0x10] sm:$0xff]
    %v86 = vld [vmem:[#allocation2 + $0x18] sm:$0xff]
    %vm87 = vcmask 261120
    %v88 = vsel %vm87, %v83, 0.0
    %89 = vadd.xlane.f32.xlu0 %v88
    %v90 = vpop.xlane.xlu0 %89
    %v91 = vsel %vm87, %v84, 0.0
    %92 = vadd.xlane.f32.xlu0 %v91
    %v93 = vpop.xlane.xlu0 %92
    %v94 = vsel %vm87, %v85, 0.0
    %95 = vadd.xlane.f32.xlu0 %v94
    %v96 = vpop.xlane.xlu0 %95
    %v97 = vsel %vm87, %v86, 0.0
    %98 = vadd.xlane.f32.xlu0 %v97
    %v99 = vpop.xlane.xlu0 %98
    %v100 = vrcp.pop 32.0
    %v101 = vmul.f32 %v90, %v100
    %v102 = vmul.f32 %v93, %v100
    %v103 = vmul.f32 %v96, %v100
    %v104 = vmul.f32 %v99, %v100
    %v105 = vsub.f32 %v83, %v101
    %v106 = vsub.f32 %v84, %v102
    %v107 = vsub.f32 %v85, %v103
    %v108 = vsub.f32 %v86, %v104
    %v109 = vmul.f32 %v105, %v105
    %v110 = vmul.f32 %v106, %v106
    %v111 = vmul.f32 %v107, %v107
    %v112 = vmul.f32 %v108, %v108
    %v113 = vsel %vm87, %v109, 0.0
    %114 = vadd.xlane.f32.xlu0 %v113
    %v115 = vpop.xlane.xlu0 %114
    %v116 = vsel %vm87, %v110, 0.0
    %117 = vadd.xlane.f32.xlu0 %v116
    %v118 = vpop.xlane.xlu0 %117
    %v119 = vsel %vm87, %v111, 0.0
    %120 = vadd.xlane.f32.xlu0 %v119
    %v121 = vpop.xlane.xlu0 %120
    %v122 = vsel %vm87, %v112, 0.0
    %123 = vadd.xlane.f32.xlu0 %v122
    %v124 = vpop.xlane.xlu0 %123
    %v125 = vmul.f32 %v115, %v100
    %v126 = vmul.f32 %v118, %v100
    %v127 = vmul.f32 %v121, %v100
    %v128 = vmul.f32 %v124, %v100
    %v129 = vadd.f32 %v125, 1e-05
    %v130 = vadd.f32 %v126, 1e-05
    %v131 = vadd.f32 %v127, 1e-05
    %v132 = vadd.f32 %v128, 1e-05
    %v133 = vrsqrt.pop %v129
    %v134 = vrsqrt.pop %v130
    %v135 = vrsqrt.pop %v131
    %v136 = vrsqrt.pop %v132
    %v137 = vmul.f32 %v105, %v133
    %v138 = vmul.f32 %v106, %v134
    %v139 = vmul.f32 %v107, %v135
    %v140 = vmul.f32 %v108, %v136
    %v141 = vlaneseq
    %v142 = vshrl.u32 %v141, 7
    %v143 = vsub.s32 0, %v142
    %v144 = vrot.slane %v76, %v143
    %v145 = vmul.f32 %v137, %v144
    %v146 = vmul.f32 %v138, %v144
    %v147 = vmul.f32 %v139, %v144
    %v148 = vmul.f32 %v140, %v144
    %v149 = vlaneseq
    %v150 = vshrl.u32 %v149, 7
    %v151 = vsub.s32 0, %v150
    %v152 = vrot.slane %v77, %v151
    %v153 = vadd.f32 %v145, %v152
    %v154 = vadd.f32 %v146, %v152
    %v155 = vadd.f32 %v147, %v152
    %v156 = vadd.f32 %v148, %v152
    %v157 = vld [vmem:[#allocation5] sm:$0xff]
    %v158 = vld [vmem:[#allocation5 + $0x8] sm:$0xff]
    %v159 = vld [vmem:[#allocation5 + $0x10] sm:$0xff]
    %v160 = vld [vmem:[#allocation5 + $0x18] sm:$0xff]
    %v162 = vsel %vm87, %v153, 0
    %v165 = vsel %vm87, %v154, 0
    %v168 = vsel %vm87, %v155, 0
    %v171 = vsel %vm87, %v156, 0
    %173 = vmatprep.subr.mxu0 0.0
    %174 = vmatpush1.msra.mxu0 %v157
    %175 = vmatprep.subr.mxu0 0.0
    %176 = vmatpush1.msra.mxu0 %v158
    %177 = vmatprep.subr.mxu0 0.0
    %178 = vmatpush1.msra.mxu0 %v159
    %179 = vmatprep.subr.mxu0 0.0
    %180 = vmatpush1.msra.mxu0 %v160
    %181 = vmatprep.subr.mxu0 0.0
    %182 = vmatpush1.msra.mxu0 0.0
    %183 = vmatprep.subr.mxu0 0.0
    %184 = vmatpush1.msra.mxu0 0.0
    %185 = vmatprep.subr.mxu0 0.0
    %186 = vmatpush1.msra.mxu0 0.0
    %187 = vmatprep.subr.mxu0 0.0
    %188 = vmatpush1.msra.mxu0 0.0
    %189 = vmatprep.subr.mxu0 0.0
    %190 = vmatpush1.msra.mxu0 0.0
    %191 = vmatprep.subr.mxu0 0.0
    %192 = vmatpush1.msra.mxu0 0.0
    %193 = vmatprep.subr.mxu0 0.0
    %194 = vmatpush1.msra.mxu0 0.0
    %195 = vmatprep.subr.mxu0 0.0
    %196 = vmatpush1.msra.mxu0 0.0
    %197 = vmatprep.subr.mxu0 0.0
    %198 = vmatpush1.msra.mxu0 0.0
    %199 = vmatprep.subr.mxu0 0.0
    %200 = vmatpush1.msra.mxu0 0.0
    %201 = vmatprep.subr.mxu0 0.0
    %202 = vmatpush1.msra.mxu0 0.0
    %203 = vmatprep.subr.mxu0 0.0
    %204 = vmatpush1.msra.mxu0 0.0
    %205 = vmatprep.subr.mxu0 0.0
    %206 = vmatpush1.msra.mxu0 0.0
    %207 = vmatprep.subr.mxu0 0.0
    %208 = vmatpush1.msra.mxu0 0.0
    %209 = vmatprep.subr.mxu0 0.0
    %210 = vmatpush1.msra.mxu0 0.0
    %211 = vmatprep.subr.mxu0 0.0
    %212 = vmatpush1.msra.mxu0 0.0
    %213 = vmatprep.subr.mxu0 0.0
    %214 = vmatpush1.msra.mxu0 0.0
    %215 = vmatprep.subr.mxu0 0.0
    %216 = vmatpush1.msra.mxu0 0.0
    %217 = vmatprep.subr.mxu0 0.0
    %218 = vmatpush1.msra.mxu0 0.0
    %219 = vmatprep.subr.mxu0 0.0
    %220 = vmatpush1.msra.mxu0 0.0
    %221 = vmatprep.subr.mxu0 0.0
    %222 = vmatpush1.msra.mxu0 0.0
    %223 = vmatprep.subr.mxu0 0.0
    %224 = vmatpush1.msra.mxu0 0.0
    %225 = vmatprep.subr.mxu0 0.0
    %226 = vmatpush1.msra.mxu0 0.0
    %227 = vmatprep.subr.mxu0 0.0
    %228 = vmatpush1.msra.mxu0 0.0
    %229 = vmatprep.subr.mxu0 0.0
    %230 = vmatpush1.msra.mxu0 0.0
    %231 = vmatprep.subr.mxu0 0.0
    %232 = vmatpush1.msra.mxu0 0.0
    %233 = vmatprep.subr.mxu0 0.0
    %234 = vmatpush1.msra.mxu0 0.0
    %235 = vmatprep.subr.mxu0 0.0
    %236 = vmatpush1.msra.mxu0 0.0
    %237 = vmatprep.mubr.f32.mxu0 0.0
    %238 = vmatmul.mubr.f32.gmra.mrb[0].mxu0 %v162
    %v239 = vpop.f32.mrb[0].mxu0
    %v240 = vadd.f32 0.0, %v239
    %v241 = vpop.f32.mrb[0].mxu0
    %242 = vmatprep.mubr.f32.mxu0 0.0
    %243 = vmatmul.mubr.f32.gmra.mrb[0].mxu0 %v165
    %v244 = vpop.f32.mrb[0].mxu0
    %v245 = vadd.f32 0.0, %v244
    %v246 = vpop.f32.mrb[0].mxu0
    %247 = vmatprep.mubr.f32.mxu0 0.0
    %248 = vmatmul.mubr.f32.gmra.mrb[0].mxu0 %v168
    %v249 = vpop.f32.mrb[0].mxu0
    %v250 = vadd.f32 0.0, %v249
    %v251 = vpop.f32.mrb[0].mxu0
    %252 = vmatprep.mubr.f32.mxu0 0.0
    %253 = vmatmul.mubr.f32.gmra.mrb[0].mxu0 %v171
    %v254 = vpop.f32.mrb[0].mxu0
    %v255 = vadd.f32 0.0, %v254
    %v256 = vpop.f32.mrb[0].mxu0
    %257 = vdwg.mxu0
    %262 = vrot.lane.b32.xlu0 %v240, 120
    %v263 = vpop.permute.xlu0 %262
    %264 = vrot.lane.b32.xlu0 %v245, 120
    %v265 = vpop.permute.xlu0 %264
    %266 = vrot.lane.b32.xlu0 %v250, 120
    %v267 = vpop.permute.xlu0 %266
    %268 = vrot.lane.b32.xlu0 %v255, 120
    %v269 = vpop.permute.xlu0 %268
    %270 = vrot.lane.b32.xlu0 %v240, 112
    %v271 = vpop.permute.xlu0 %270
    %272 = vrot.lane.b32.xlu0 %v245, 112
    %v273 = vpop.permute.xlu0 %272
    %274 = vrot.lane.b32.xlu0 %v250, 112
    %v275 = vpop.permute.xlu0 %274
    %276 = vrot.lane.b32.xlu0 %v255, 112
    %v277 = vpop.permute.xlu0 %276
    %278 = vrot.lane.b32.xlu0 %v240, 104
    %v279 = vpop.permute.xlu0 %278
    %280 = vrot.lane.b32.xlu0 %v245, 104
    %v281 = vpop.permute.xlu0 %280
    %282 = vrot.lane.b32.xlu0 %v250, 104
    %v283 = vpop.permute.xlu0 %282
    %284 = vrot.lane.b32.xlu0 %v255, 104
    %v285 = vpop.permute.xlu0 %284
    %286 = vrot.lane.b32.xlu0 %v240, 96
    %v287 = vpop.permute.xlu0 %286
    %288 = vrot.lane.b32.xlu0 %v245, 96
    %v289 = vpop.permute.xlu0 %288
    %vm290 = vcmask 64512
    %v291 = vsel %vm290, %v240, 0
    %v293 = vsel %vm290, %v245, 0
    %v295 = vsel %vm290, %v287, 0
    %v297 = vsel %vm290, %v289, 0
    %299 = vmatprep.subr.mxu0 0.0
    %300 = vmatpush1.xpose.msra.mxu0 %v295
    %301 = vmatprep.subr.mxu0 0.0
    %302 = vmatpush1.xpose.msra.mxu0 %v297
    %303 = vmatprep.subr.mxu0 0.0
    %304 = vmatpush1.xpose.msra.mxu0 0.0
    %305 = vmatprep.subr.mxu0 0.0
    %306 = vmatpush1.xpose.msra.mxu0 0.0
    %307 = vmatprep.subr.mxu0 0.0
    %308 = vmatpush1.xpose.msra.mxu0 0.0
    %309 = vmatprep.subr.mxu0 0.0
    %310 = vmatpush1.xpose.msra.mxu0 0.0
    %311 = vmatprep.subr.mxu0 0.0
    %312 = vmatpush1.xpose.msra.mxu0 0.0
    %313 = vmatprep.subr.mxu0 0.0
    %314 = vmatpush1.xpose.msra.mxu0 0.0
    %315 = vmatprep.subr.mxu0 0.0
    %316 = vmatpush1.xpose.msra.mxu0 0.0
    %317 = vmatprep.subr.mxu0 0.0
    %318 = vmatpush1.xpose.msra.mxu0 0.0
    %319 = vmatprep.subr.mxu0 0.0
    %320 = vmatpush1.xpose.msra.mxu0 0.0
    %321 = vmatprep.subr.mxu0 0.0
    %322 = vmatpush1.xpose.msra.mxu0 0.0
    %323 = vmatprep.subr.mxu0 0.0
    %324 = vmatpush1.xpose.msra.mxu0 0.0
    %325 = vmatprep.subr.mxu0 0.0
    %326 = vmatpush1.xpose.msra.mxu0 0.0
    %327 = vmatprep.subr.mxu0 0.0
    %328 = vmatpush1.xpose.msra.mxu0 0.0
    %329 = vmatprep.subr.mxu0 0.0
    %330 = vmatpush1.xpose.msra.mxu0 0.0
    %331 = vmatprep.subr.mxu0 0.0
    %332 = vmatpush1.xpose.msra.mxu0 0.0
    %333 = vmatprep.subr.mxu0 0.0
    %334 = vmatpush1.xpose.msra.mxu0 0.0
    %335 = vmatprep.subr.mxu0 0.0
    %336 = vmatpush1.xpose.msra.mxu0 0.0
    %337 = vmatprep.subr.mxu0 0.0
    %338 = vmatpush1.xpose.msra.mxu0 0.0
    %339 = vmatprep.subr.mxu0 0.0
    %340 = vmatpush1.xpose.msra.mxu0 0.0
    %341 = vmatprep.subr.mxu0 0.0
    %342 = vmatpush1.xpose.msra.mxu0 0.0
    %343 = vmatprep.subr.mxu0 0.0
    %344 = vmatpush1.xpose.msra.mxu0 0.0
    %345 = vmatprep.subr.mxu0 0.0
    %346 = vmatpush1.xpose.msra.mxu0 0.0
    %347 = vmatprep.subr.mxu0 0.0
    %348 = vmatpush1.xpose.msra.mxu0 0.0
    %349 = vmatprep.subr.mxu0 0.0
    %350 = vmatpush1.xpose.msra.mxu0 0.0
    %351 = vmatprep.subr.mxu0 0.0
    %352 = vmatpush1.xpose.msra.mxu0 0.0
    %353 = vmatprep.subr.mxu0 0.0
    %354 = vmatpush1.xpose.msra.mxu0 0.0
    %355 = vmatprep.subr.mxu0 0.0
    %356 = vmatpush1.xpose.msra.mxu0 0.0
    %357 = vmatprep.subr.mxu0 0.0
    %358 = vmatpush1.xpose.msra.mxu0 0.0
    %359 = vmatprep.subr.mxu0 0.0
    %360 = vmatpush1.xpose.msra.mxu0 0.0
    %361 = vmatprep.subr.mxu0 0.0
    %362 = vmatpush1.xpose.msra.mxu0 0.0
    %363 = vmatprep.mubr.f32.mxu0 0.0
    %364 = vmatmul.mubr.f32.gmra.mrb[0].mxu0 %v291
    %v365 = vpop.f32.mrb[0].mxu0
    %v366 = vadd.f32 0.0, %v365
    %v367 = vpop.f32.mrb[0].mxu0
    %368 = vmatprep.mubr.f32.mxu0 0.0
    %369 = vmatmul.mubr.f32.gmra.mrb[0].mxu0 %v293
    %v370 = vpop.f32.mrb[0].mxu0
    %v371 = vadd.f32 0.0, %v370
    %v372 = vpop.f32.mrb[0].mxu0
    %373 = vdwg.mxu0
    %374 = vrot.lane.b32.xlu0 %v250, 96
    %v375 = vpop.permute.xlu0 %374
    %376 = vrot.lane.b32.xlu0 %v255, 96
    %v377 = vpop.permute.xlu0 %376
    %v378 = vsel %vm290, %v250, 0
    %v380 = vsel %vm290, %v255, 0
    %v382 = vsel %vm290, %v375, 0
    %v384 = vsel %vm290, %v377, 0
    %386 = vmatprep.subr.mxu0 0.0
    %387 = vmatpush1.xpose.msra.mxu0 %v382
    %388 = vmatprep.subr.mxu0 0.0
    %389 = vmatpush1.xpose.msra.mxu0 %v384
    %390 = vmatprep.subr.mxu0 0.0
    %391 = vmatpush1.xpose.msra.mxu0 0.0
    %392 = vmatprep.subr.mxu0 0.0
    %393 = vmatpush1.xpose.msra.mxu0 0.0
    %394 = vmatprep.subr.mxu0 0.0
    %395 = vmatpush1.xpose.msra.mxu0 0.0
    %396 = vmatprep.subr.mxu0 0.0
    %397 = vmatpush1.xpose.msra.mxu0 0.0
    %398 = vmatprep.subr.mxu0 0.0
    %399 = vmatpush1.xpose.msra.mxu0 0.0
    %400 = vmatprep.subr.mxu0 0.0
    %401 = vmatpush1.xpose.msra.mxu0 0.0
    %402 = vmatprep.subr.mxu0 0.0
    %403 = vmatpush1.xpose.msra.mxu0 0.0
    %404 = vmatprep.subr.mxu0 0.0
    %405 = vmatpush1.xpose.msra.mxu0 0.0
    %406 = vmatprep.subr.mxu0 0.0
    %407 = vmatpush1.xpose.msra.mxu0 0.0
    %408 = vmatprep.subr.mxu0 0.0
    %409 = vmatpush1.xpose.msra.mxu0 0.0
    %410 = vmatprep.subr.mxu0 0.0
    %411 = vmatpush1.xpose.msra.mxu0 0.0
    %412 = vmatprep.subr.mxu0 0.0
    %413 = vmatpush1.xpose.msra.mxu0 0.0
    %414 = vmatprep.subr.mxu0 0.0
    %415 = vmatpush1.xpose.msra.mxu0 0.0
    %416 = vmatprep.subr.mxu0 0.0
    %417 = vmatpush1.xpose.msra.mxu0 0.0
    %418 = vmatprep.subr.mxu0 0.0
    %419 = vmatpush1.xpose.msra.mxu0 0.0
    %420 = vmatprep.subr.mxu0 0.0
    %421 = vmatpush1.xpose.msra.mxu0 0.0
    %422 = vmatprep.subr.mxu0 0.0
    %423 = vmatpush1.xpose.msra.mxu0 0.0
    %424 = vmatprep.subr.mxu0 0.0
    %425 = vmatpush1.xpose.msra.mxu0 0.0
    %426 = vmatprep.subr.mxu0 0.0
    %427 = vmatpush1.xpose.msra.mxu0 0.0
    %428 = vmatprep.subr.mxu0 0.0
    %429 = vmatpush1.xpose.msra.mxu0 0.0
    %430 = vmatprep.subr.mxu0 0.0
    %431 = vmatpush1.xpose.msra.mxu0 0.0
    %432 = vmatprep.subr.mxu0 0.0
    %433 = vmatpush1.xpose.msra.mxu0 0.0
    %434 = vmatprep.subr.mxu0 0.0
    %435 = vmatpush1.xpose.msra.mxu0 0.0
    %436 = vmatprep.subr.mxu0 0.0
    %437 = vmatpush1.xpose.msra.mxu0 0.0
    %438 = vmatprep.subr.mxu0 0.0
    %439 = vmatpush1.xpose.msra.mxu0 0.0
    %440 = vmatprep.subr.mxu0 0.0
    %441 = vmatpush1.xpose.msra.mxu0 0.0
    %442 = vmatprep.subr.mxu0 0.0
    %443 = vmatpush1.xpose.msra.mxu0 0.0
    %444 = vmatprep.subr.mxu0 0.0
    %445 = vmatpush1.xpose.msra.mxu0 0.0
    %446 = vmatprep.subr.mxu0 0.0
    %447 = vmatpush1.xpose.msra.mxu0 0.0
    %448 = vmatprep.subr.mxu0 0.0
    %449 = vmatpush1.xpose.msra.mxu0 0.0
    %450 = vmatprep.mubr.f32.mxu0 0.0
    %451 = vmatmul.mubr.f32.gmra.mrb[0].mxu0 %v378
    %v452 = vpop.f32.mrb[0].mxu0
    %v453 = vadd.f32 0.0, %v452
    %v454 = vpop.f32.mrb[0].mxu0
    %455 = vmatprep.mubr.f32.mxu0 0.0
    %456 = vmatmul.mubr.f32.gmra.mrb[0].mxu0 %v380
    %v457 = vpop.f32.mrb[0].mxu0
    %v458 = vadd.f32 0.0, %v457
    %v459 = vpop.f32.mrb[0].mxu0
    %460 = vdwg.mxu0
    %461 = vrot.lane.b32.xlu0 %v263, 96
    %v462 = vpop.permute.xlu0 %461
    %463 = vrot.lane.b32.xlu0 %v265, 96
    %v464 = vpop.permute.xlu0 %463
    %v465 = vsel %vm290, %v263, 0
    %v467 = vsel %vm290, %v265, 0
    %v469 = vsel %vm290, %v462, 0
    %v471 = vsel %vm290, %v464, 0
    %473 = vmatprep.subr.mxu0 0.0
    %474 = vmatpush1.xpose.msra.mxu0 %v469
    %475 = vmatprep.subr.mxu0 0.0
    %476 = vmatpush1.xpose.msra.mxu0 %v471
    %477 = vmatprep.subr.mxu0 0.0
    %478 = vmatpush1.xpose.msra.mxu0 0.0
    %479 = vmatprep.subr.mxu0 0.0
    %480 = vmatpush1.xpose.msra.mxu0 0.0
    %481 = vmatprep.subr.mxu0 0.0
    %482 = vmatpush1.xpose.msra.mxu0 0.0
    %483 = vmatprep.subr.mxu0 0.0
    %484 = vmatpush1.xpose.msra.mxu0 0.0
    %485 = vmatprep.subr.mxu0 0.0
    %486 = vmatpush1.xpose.msra.mxu0 0.0
    %487 = vmatprep.subr.mxu0 0.0
    %488 = vmatpush1.xpose.msra.mxu0 0.0
    %489 = vmatprep.subr.mxu0 0.0
    %490 = vmatpush1.xpose.msra.mxu0 0.0
    %491 = vmatprep.subr.mxu0 0.0
    %492 = vmatpush1.xpose.msra.mxu0 0.0
    %493 = vmatprep.subr.mxu0 0.0
    %494 = vmatpush1.xpose.msra.mxu0 0.0
    %495 = vmatprep.subr.mxu0 0.0
    %496 = vmatpush1.xpose.msra.mxu0 0.0
    %497 = vmatprep.subr.mxu0 0.0
    %498 = vmatpush1.xpose.msra.mxu0 0.0
    %499 = vmatprep.subr.mxu0 0.0
    %500 = vmatpush1.xpose.msra.mxu0 0.0
    %501 = vmatprep.subr.mxu0 0.0
    %502 = vmatpush1.xpose.msra.mxu0 0.0
    %503 = vmatprep.subr.mxu0 0.0
    %504 = vmatpush1.xpose.msra.mxu0 0.0
    %505 = vmatprep.subr.mxu0 0.0
    %506 = vmatpush1.xpose.msra.mxu0 0.0
    %507 = vmatprep.subr.mxu0 0.0
    %508 = vmatpush1.xpose.msra.mxu0 0.0
    %509 = vmatprep.subr.mxu0 0.0
    %510 = vmatpush1.xpose.msra.mxu0 0.0
    %511 = vmatprep.subr.mxu0 0.0
    %512 = vmatpush1.xpose.msra.mxu0 0.0
    %513 = vmatprep.subr.mxu0 0.0
    %514 = vmatpush1.xpose.msra.mxu0 0.0
    %515 = vmatprep.subr.mxu0 0.0
    %516 = vmatpush1.xpose.msra.mxu0 0.0
    %517 = vmatprep.subr.mxu0 0.0
    %518 = vmatpush1.xpose.msra.mxu0 0.0
    %519 = vmatprep.subr.mxu0 0.0
    %520 = vmatpush1.xpose.msra.mxu0 0.0
    %521 = vmatprep.subr.mxu0 0.0
    %522 = vmatpush1.xpose.msra.mxu0 0.0
    %523 = vmatprep.subr.mxu0 0.0
    %524 = vmatpush1.xpose.msra.mxu0 0.0
    %525 = vmatprep.subr.mxu0 0.0
    %526 = vmatpush1.xpose.msra.mxu0 0.0
    %527 = vmatprep.subr.mxu0 0.0
    %528 = vmatpush1.xpose.msra.mxu0 0.0
    %529 = vmatprep.subr.mxu0 0.0
    %530 = vmatpush1.xpose.msra.mxu0 0.0
    %531 = vmatprep.subr.mxu0 0.0
    %532 = vmatpush1.xpose.msra.mxu0 0.0
    %533 = vmatprep.subr.mxu0 0.0
    %534 = vmatpush1.xpose.msra.mxu0 0.0
    %535 = vmatprep.subr.mxu0 0.0
    %536 = vmatpush1.xpose.msra.mxu0 0.0
    %537 = vmatprep.mubr.f32.mxu0 0.0
    %538 = vmatmul.mubr.f32.gmra.mrb[0].mxu0 %v465
    %v539 = vpop.f32.mrb[0].mxu0
    %v540 = vadd.f32 0.0, %v539
    %v541 = vpop.f32.mrb[0].mxu0
    %542 = vmatprep.mubr.f32.mxu0 0.0
    %543 = vmatmul.mubr.f32.gmra.mrb[0].mxu0 %v467
    %v544 = vpop.f32.mrb[0].mxu0
    %v545 = vadd.f32 0.0, %v544
    %v546 = vpop.f32.mrb[0].mxu0
    %547 = vdwg.mxu0
    %548 = vrot.lane.b32.xlu0 %v267, 96
    %v549 = vpop.permute.xlu0 %548
    %550 = vrot.lane.b32.xlu0 %v269, 96
    %v551 = vpop.permute.xlu0 %550
    %v552 = vsel %vm290, %v267, 0
    %v554 = vsel %vm290, %v269, 0
    %v556 = vsel %vm290, %v549, 0
    %v558 = vsel %vm290, %v551, 0
    %560 = vmatprep.subr.mxu0 0.0
    %561 = vmatpush1.xpose.msra.mxu0 %v556
    %562 = vmatprep.subr.mxu0 0.0
    %563 = vmatpush1.xpose.msra.mxu0 %v558
    %564 = vmatprep.subr.mxu0 0.0
    %565 = vmatpush1.xpose.msra.mxu0 0.0
    %566 = vmatprep.subr.mxu0 0.0
    %567 = vmatpush1.xpose.msra.mxu0 0.0
    %568 = vmatprep.subr.mxu0 0.0
    %569 = vmatpush1.xpose.msra.mxu0 0.0
    %570 = vmatprep.subr.mxu0 0.0
    %571 = vmatpush1.xpose.msra.mxu0 0.0
    %572 = vmatprep.subr.mxu0 0.0
    %573 = vmatpush1.xpose.msra.mxu0 0.0
    %574 = vmatprep.subr.mxu0 0.0
    %575 = vmatpush1.xpose.msra.mxu0 0.0
    %576 = vmatprep.subr.mxu0 0.0
    %577 = vmatpush1.xpose.msra.mxu0 0.0
    %578 = vmatprep.subr.mxu0 0.0
    %579 = vmatpush1.xpose.msra.mxu0 0.0
    %580 = vmatprep.subr.mxu0 0.0
    %581 = vmatpush1.xpose.msra.mxu0 0.0
    %582 = vmatprep.subr.mxu0 0.0
    %583 = vmatpush1.xpose.msra.mxu0 0.0
    %584 = vmatprep.subr.mxu0 0.0
    %585 = vmatpush1.xpose.msra.mxu0 0.0
    %586 = vmatprep.subr.mxu0 0.0
    %587 = vmatpush1.xpose.msra.mxu0 0.0
    %588 = vmatprep.subr.mxu0 0.0
    %589 = vmatpush1.xpose.msra.mxu0 0.0
    %590 = vmatprep.subr.mxu0 0.0
    %591 = vmatpush1.xpose.msra.mxu0 0.0
    %592 = vmatprep.subr.mxu0 0.0
    %593 = vmatpush1.xpose.msra.mxu0 0.0
    %594 = vmatprep.subr.mxu0 0.0
    %595 = vmatpush1.xpose.msra.mxu0 0.0
    %596 = vmatprep.subr.mxu0 0.0
    %597 = vmatpush1.xpose.msra.mxu0 0.0
    %598 = vmatprep.subr.mxu0 0.0
    %599 = vmatpush1.xpose.msra.mxu0 0.0
    %600 = vmatprep.subr.mxu0 0.0
    %601 = vmatpush1.xpose.msra.mxu0 0.0
    %602 = vmatprep.subr.mxu0 0.0
    %603 = vmatpush1.xpose.msra.mxu0 0.0
    %604 = vmatprep.subr.mxu0 0.0
    %605 = vmatpush1.xpose.msra.mxu0 0.0
    %606 = vmatprep.subr.mxu0 0.0
    %607 = vmatpush1.xpose.msra.mxu0 0.0
    %608 = vmatprep.subr.mxu0 0.0
    %609 = vmatpush1.xpose.msra.mxu0 0.0
    %610 = vmatprep.subr.mxu0 0.0
    %611 = vmatpush1.xpose.msra.mxu0 0.0
    %612 = vmatprep.subr.mxu0 0.0
    %613 = vmatpush1.xpose.msra.mxu0 0.0
    %614 = vmatprep.subr.mxu0 0.0
    %615 = vmatpush1.xpose.msra.mxu0 0.0
    %616 = vmatprep.subr.mxu0 0.0
    %617 = vmatpush1.xpose.msra.mxu0 0.0
    %618 = vmatprep.subr.mxu0 0.0
    %619 = vmatpush1.xpose.msra.mxu0 0.0
    %620 = vmatprep.subr.mxu0 0.0
    %621 = vmatpush1.xpose.msra.mxu0 0.0
    %622 = vmatprep.subr.mxu0 0.0
    %623 = vmatpush1.xpose.msra.mxu0 0.0
    %624 = vmatprep.mubr.f32.mxu0 0.0
    %625 = vmatmul.mubr.f32.gmra.mrb[0].mxu0 %v552
    %v626 = vpop.f32.mrb[0].mxu0
    %v627 = vadd.f32 0.0, %v626
    %v628 = vpop.f32.mrb[0].mxu0
    %629 = vmatprep.mubr.f32.mxu0 0.0
    %630 = vmatmul.mubr.f32.gmra.mrb[0].mxu0 %v554
    %v631 = vpop.f32.mrb[0].mxu0
    %v632 = vadd.f32 0.0, %v631
    %v633 = vpop.f32.mrb[0].mxu0
    %634 = vdwg.mxu0
    %635 = vrot.lane.b32.xlu0 %v271, 96
    %v636 = vpop.permute.xlu0 %635
    %637 = vrot.lane.b32.xlu0 %v273, 96
    %v638 = vpop.permute.xlu0 %637
    %v639 = vsel %vm290, %v271, 0
    %v641 = vsel %vm290, %v273, 0
    %v643 = vsel %vm290, %v636, 0
    %v645 = vsel %vm290, %v638, 0
    %647 = vmatprep.subr.mxu0 0.0
    %648 = vmatpush1.xpose.msra.mxu0 %v643
    %649 = vmatprep.subr.mxu0 0.0
    %650 = vmatpush1.xpose.msra.mxu0 %v645
    %651 = vmatprep.subr.mxu0 0.0
    %652 = vmatpush1.xpose.msra.mxu0 0.0
    %653 = vmatprep.subr.mxu0 0.0
    %654 = vmatpush1.xpose.msra.mxu0 0.0
    %655 = vmatprep.subr.mxu0 0.0
    %656 = vmatpush1.xpose.msra.mxu0 0.0
    %657 = vmatprep.subr.mxu0 0.0
    %658 = vmatpush1.xpose.msra.mxu0 0.0
    %659 = vmatprep.subr.mxu0 0.0
    %660 = vmatpush1.xpose.msra.mxu0 0.0
    %661 = vmatprep.subr.mxu0 0.0
    %662 = vmatpush1.xpose.msra.mxu0 0.0
    %663 = vmatprep.subr.mxu0 0.0
    %664 = vmatpush1.xpose.msra.mxu0 0.0
    %665 = vmatprep.subr.mxu0 0.0
    %666 = vmatpush1.xpose.msra.mxu0 0.0
    %667 = vmatprep.subr.mxu0 0.0
    %668 = vmatpush1.xpose.msra.mxu0 0.0
    %669 = vmatprep.subr.mxu0 0.0
    %670 = vmatpush1.xpose.msra.mxu0 0.0
    %671 = vmatprep.subr.mxu0 0.0
    %672 = vmatpush1.xpose.msra.mxu0 0.0
    %673 = vmatprep.subr.mxu0 0.0
    %674 = vmatpush1.xpose.msra.mxu0 0.0
    %675 = vmatprep.subr.mxu0 0.0
    %676 = vmatpush1.xpose.msra.mxu0 0.0
    %677 = vmatprep.subr.mxu0 0.0
    %678 = vmatpush1.xpose.msra.mxu0 0.0
    %679 = vmatprep.subr.mxu0 0.0
    %680 = vmatpush1.xpose.msra.mxu0 0.0
    %681 = vmatprep.subr.mxu0 0.0
    %682 = vmatpush1.xpose.msra.mxu0 0.0
    %683 = vmatprep.subr.mxu0 0.0
    %684 = vmatpush1.xpose.msra.mxu0 0.0
    %685 = vmatprep.subr.mxu0 0.0
    %686 = vmatpush1.xpose.msra.mxu0 0.0
    %687 = vmatprep.subr.mxu0 0.0
    %688 = vmatpush1.xpose.msra.mxu0 0.0
    %689 = vmatprep.subr.mxu0 0.0
    %690 = vmatpush1.xpose.msra.mxu0 0.0
    %691 = vmatprep.subr.mxu0 0.0
    %692 = vmatpush1.xpose.msra.mxu0 0.0
    %693 = vmatprep.subr.mxu0 0.0
    %694 = vmatpush1.xpose.msra.mxu0 0.0
    %695 = vmatprep.subr.mxu0 0.0
    %696 = vmatpush1.xpose.msra.mxu0 0.0
    %697 = vmatprep.subr.mxu0 0.0
    %698 = vmatpush1.xpose.msra.mxu0 0.0
    %699 = vmatprep.subr.mxu0 0.0
    %700 = vmatpush1.xpose.msra.mxu0 0.0
    %701 = vmatprep.subr.mxu0 0.0
    %702 = vmatpush1.xpose.msra.mxu0 0.0
    %703 = vmatprep.subr.mxu0 0.0
    %704 = vmatpush1.xpose.msra.mxu0 0.0
    %705 = vmatprep.subr.mxu0 0.0
    %706 = vmatpush1.xpose.msra.mxu0 0.0
    %707 = vmatprep.subr.mxu0 0.0
    %708 = vmatpush1.xpose.msra.mxu0 0.0
    %709 = vmatprep.subr.mxu0 0.0
    %710 = vmatpush1.xpose.msra.mxu0 0.0
    %711 = vmatprep.mubr.f32.mxu0 0.0
    %712 = vmatmul.mubr.f32.gmra.mrb[0].mxu0 %v639
    %v713 = vpop.f32.mrb[0].mxu0
    %v714 = vadd.f32 0.0, %v713
    %v715 = vpop.f32.mrb[0].mxu0
    %716 = vmatprep.mubr.f32.mxu0 0.0
    %717 = vmatmul.mubr.f32.gmra.mrb[0].mxu0 %v641
    %v718 = vpop.f32.mrb[0].mxu0
    %v719 = vadd.f32 0.0, %v718
    %v720 = vpop.f32.mrb[0].mxu0
    %721 = vdwg.mxu0
    %722 = vrot.lane.b32.xlu0 %v275, 96
    %v723 = vpop.permute.xlu0 %722
    %724 = vrot.lane.b32.xlu0 %v277, 96
    %v725 = vpop.permute.xlu0 %724
    %v726 = vsel %vm290, %v275, 0
    %v728 = vsel %vm290, %v277, 0
    %v730 = vsel %vm290, %v723, 0
    %v732 = vsel %vm290, %v725, 0
    %734 = vmatprep.subr.mxu0 0.0
    %735 = vmatpush1.xpose.msra.mxu0 %v730
    %736 = vmatprep.subr.mxu0 0.0
    %737 = vmatpush1.xpose.msra.mxu0 %v732
    %738 = vmatprep.subr.mxu0 0.0
    %739 = vmatpush1.xpose.msra.mxu0 0.0
    %740 = vmatprep.subr.mxu0 0.0
    %741 = vmatpush1.xpose.msra.mxu0 0.0
    %742 = vmatprep.subr.mxu0 0.0
    %743 = vmatpush1.xpose.msra.mxu0 0.0
    %744 = vmatprep.subr.mxu0 0.0
    %745 = vmatpush1.xpose.msra.mxu0 0.0
    %746 = vmatprep.subr.mxu0 0.0
    %747 = vmatpush1.xpose.msra.mxu0 0.0
    %748 = vmatprep.subr.mxu0 0.0
    %749 = vmatpush1.xpose.msra.mxu0 0.0
    %750 = vmatprep.subr.mxu0 0.0
    %751 = vmatpush1.xpose.msra.mxu0 0.0
    %752 = vmatprep.subr.mxu0 0.0
    %753 = vmatpush1.xpose.msra.mxu0 0.0
    %754 = vmatprep.subr.mxu0 0.0
    %755 = vmatpush1.xpose.msra.mxu0 0.0
    %756 = vmatprep.subr.mxu0 0.0
    %757 = vmatpush1.xpose.msra.mxu0 0.0
    %758 = vmatprep.subr.mxu0 0.0
    %759 = vmatpush1.xpose.msra.mxu0 0.0
    %760 = vmatprep.subr.mxu0 0.0
    %761 = vmatpush1.xpose.msra.mxu0 0.0
    %762 = vmatprep.subr.mxu0 0.0
    %763 = vmatpush1.xpose.msra.mxu0 0.0
    %764 = vmatprep.subr.mxu0 0.0
    %765 = vmatpush1.xpose.msra.mxu0 0.0
    %766 = vmatprep.subr.mxu0 0.0
    %767 = vmatpush1.xpose.msra.mxu0 0.0
    %768 = vmatprep.subr.mxu0 0.0
    %769 = vmatpush1.xpose.msra.mxu0 0.0
    %770 = vmatprep.subr.mxu0 0.0
    %771 = vmatpush1.xpose.msra.mxu0 0.0
    %772 = vmatprep.subr.mxu0 0.0
    %773 = vmatpush1.xpose.msra.mxu0 0.0
    %774 = vmatprep.subr.mxu0 0.0
    %775 = vmatpush1.xpose.msra.mxu0 0.0
    %776 = vmatprep.subr.mxu0 0.0
    %777 = vmatpush1.xpose.msra.mxu0 0.0
    %778 = vmatprep.subr.mxu0 0.0
    %779 = vmatpush1.xpose.msra.mxu0 0.0
    %780 = vmatprep.subr.mxu0 0.0
    %781 = vmatpush1.xpose.msra.mxu0 0.0
    %782 = vmatprep.subr.mxu0 0.0
    %783 = vmatpush1.xpose.msra.mxu0 0.0
    %784 = vmatprep.subr.mxu0 0.0
    %785 = vmatpush1.xpose.msra.mxu0 0.0
    %786 = vmatprep.subr.mxu0 0.0
    %787 = vmatpush1.xpose.msra.mxu0 0.0
    %788 = vmatprep.subr.mxu0 0.0
    %789 = vmatpush1.xpose.msra.mxu0 0.0
    %790 = vmatprep.subr.mxu0 0.0
    %791 = vmatpush1.xpose.msra.mxu0 0.0
    %792 = vmatprep.subr.mxu0 0.0
    %793 = vmatpush1.xpose.msra.mxu0 0.0
    %794 = vmatprep.subr.mxu0 0.0
    %795 = vmatpush1.xpose.msra.mxu0 0.0
    %796 = vmatprep.subr.mxu0 0.0
    %797 = vmatpush1.xpose.msra.mxu0 0.0
    %798 = vmatprep.mubr.f32.mxu0 0.0
    %799 = vmatmul.mubr.f32.gmra.mrb[0].mxu0 %v726
    %v800 = vpop.f32.mrb[0].mxu0
    %v801 = vadd.f32 0.0, %v800
    %v802 = vpop.f32.mrb[0].mxu0
    %803 = vmatprep.mubr.f32.mxu0 0.0
    %804 = vmatmul.mubr.f32.gmra.mrb[0].mxu0 %v728
    %v805 = vpop.f32.mrb[0].mxu0
    %v806 = vadd.f32 0.0, %v805
    %v807 = vpop.f32.mrb[0].mxu0
    %808 = vdwg.mxu0
    %809 = vrot.lane.b32.xlu0 %v279, 96
    %v810 = vpop.permute.xlu0 %809
    %811 = vrot.lane.b32.xlu0 %v281, 96
    %v812 = vpop.permute.xlu0 %811
    %v813 = vsel %vm290, %v279, 0
    %v815 = vsel %vm290, %v281, 0
    %v817 = vsel %vm290, %v810, 0
    %v819 = vsel %vm290, %v812, 0
    %821 = vmatprep.subr.mxu0 0.0
    %822 = vmatpush1.xpose.msra.mxu0 %v817
    %823 = vmatprep.subr.mxu0 0.0
    %824 = vmatpush1.xpose.msra.mxu0 %v819
    %825 = vmatprep.subr.mxu0 0.0
    %826 = vmatpush1.xpose.msra.mxu0 0.0
    %827 = vmatprep.subr.mxu0 0.0
    %828 = vmatpush1.xpose.msra.mxu0 0.0
    %829 = vmatprep.subr.mxu0 0.0
    %830 = vmatpush1.xpose.msra.mxu0 0.0
    %831 = vmatprep.subr.mxu0 0.0
    %832 = vmatpush1.xpose.msra.mxu0 0.0
    %833 = vmatprep.subr.mxu0 0.0
    %834 = vmatpush1.xpose.msra.mxu0 0.0
    %835 = vmatprep.subr.mxu0 0.0
    %836 = vmatpush1.xpose.msra.mxu0 0.0
    %837 = vmatprep.subr.mxu0 0.0
    %838 = vmatpush1.xpose.msra.mxu0 0.0
    %839 = vmatprep.subr.mxu0 0.0
    %840 = vmatpush1.xpose.msra.mxu0 0.0
    %841 = vmatprep.subr.mxu0 0.0
    %842 = vmatpush1.xpose.msra.mxu0 0.0
    %843 = vmatprep.subr.mxu0 0.0
    %844 = vmatpush1.xpose.msra.mxu0 0.0
    %845 = vmatprep.subr.mxu0 0.0
    %846 = vmatpush1.xpose.msra.mxu0 0.0
    %847 = vmatprep.subr.mxu0 0.0
    %848 = vmatpush1.xpose.msra.mxu0 0.0
    %849 = vmatprep.subr.mxu0 0.0
    %850 = vmatpush1.xpose.msra.mxu0 0.0
    %851 = vmatprep.subr.mxu0 0.0
    %852 = vmatpush1.xpose.msra.mxu0 0.0
    %853 = vmatprep.subr.mxu0 0.0
    %854 = vmatpush1.xpose.msra.mxu0 0.0
    %855 = vmatprep.subr.mxu0 0.0
    %856 = vmatpush1.xpose.msra.mxu0 0.0
    %857 = vmatprep.subr.mxu0 0.0
    %858 = vmatpush1.xpose.msra.mxu0 0.0
    %859 = vmatprep.subr.mxu0 0.0
    %860 = vmatpush1.xpose.msra.mxu0 0.0
    %861 = vmatprep.subr.mxu0 0.0
    %862 = vmatpush1.xpose.msra.mxu0 0.0
    %863 = vmatprep.subr.mxu0 0.0
    %864 = vmatpush1.xpose.msra.mxu0 0.0
    %865 = vmatprep.subr.mxu0 0.0
    %866 = vmatpush1.xpose.msra.mxu0 0.0
    %867 = vmatprep.subr.mxu0 0.0
    %868 = vmatpush1.xpose.msra.mxu0 0.0
    %869 = vmatprep.subr.mxu0 0.0
    %870 = vmatpush1.xpose.msra.mxu0 0.0
    %871 = vmatprep.subr.mxu0 0.0
    %872 = vmatpush1.xpose.msra.mxu0 0.0
    %873 = vmatprep.subr.mxu0 0.0
    %874 = vmatpush1.xpose.msra.mxu0 0.0
    %875 = vmatprep.subr.mxu0 0.0
    %876 = vmatpush1.xpose.msra.mxu0 0.0
    %877 = vmatprep.subr.mxu0 0.0
    %878 = vmatpush1.xpose.msra.mxu0 0.0
    %879 = vmatprep.subr.mxu0 0.0
    %880 = vmatpush1.xpose.msra.mxu0 0.0
    %881 = vmatprep.subr.mxu0 0.0
    %882 = vmatpush1.xpose.msra.mxu0 0.0
    %883 = vmatprep.subr.mxu0 0.0
    %884 = vmatpush1.xpose.msra.mxu0 0.0
    %885 = vmatprep.mubr.f32.mxu0 0.0
    %886 = vmatmul.mubr.f32.gmra.mrb[0].mxu0 %v813
    %v887 = vpop.f32.mrb[0].mxu0
    %v888 = vadd.f32 0.0, %v887
    %v889 = vpop.f32.mrb[0].mxu0
    %890 = vmatprep.mubr.f32.mxu0 0.0
    %891 = vmatmul.mubr.f32.gmra.mrb[0].mxu0 %v815
    %v892 = vpop.f32.mrb[0].mxu0
    %v893 = vadd.f32 0.0, %v892
    %v894 = vpop.f32.mrb[0].mxu0
    %895 = vdwg.mxu0
    %896 = vrot.lane.b32.xlu0 %v283, 96
    %v897 = vpop.permute.xlu0 %896
    %898 = vrot.lane.b32.xlu0 %v285, 96
    %v899 = vpop.permute.xlu0 %898
    %v900 = vsel %vm290, %v283, 0
    %v902 = vsel %vm290, %v285, 0
    %v904 = vsel %vm290, %v897, 0
    %v906 = vsel %vm290, %v899, 0
    %908 = vmatprep.subr.mxu0 0.0
    %909 = vmatpush1.xpose.msra.mxu0 %v904
    %910 = vmatprep.subr.mxu0 0.0
    %911 = vmatpush1.xpose.msra.mxu0 %v906
    %912 = vmatprep.subr.mxu0 0.0
    %913 = vmatpush1.xpose.msra.mxu0 0.0
    %914 = vmatprep.subr.mxu0 0.0
    %915 = vmatpush1.xpose.msra.mxu0 0.0
    %916 = vmatprep.subr.mxu0 0.0
    %917 = vmatpush1.xpose.msra.mxu0 0.0
    %918 = vmatprep.subr.mxu0 0.0
    %919 = vmatpush1.xpose.msra.mxu0 0.0
    %920 = vmatprep.subr.mxu0 0.0
    %921 = vmatpush1.xpose.msra.mxu0 0.0
    %922 = vmatprep.subr.mxu0 0.0
    %923 = vmatpush1.xpose.msra.mxu0 0.0
    %924 = vmatprep.subr.mxu0 0.0
    %925 = vmatpush1.xpose.msra.mxu0 0.0
    %926 = vmatprep.subr.mxu0 0.0
    %927 = vmatpush1.xpose.msra.mxu0 0.0
    %928 = vmatprep.subr.mxu0 0.0
    %929 = vmatpush1.xpose.msra.mxu0 0.0
    %930 = vmatprep.subr.mxu0 0.0
    %931 = vmatpush1.xpose.msra.mxu0 0.0
    %932 = vmatprep.subr.mxu0 0.0
    %933 = vmatpush1.xpose.msra.mxu0 0.0
    %934 = vmatprep.subr.mxu0 0.0
    %935 = vmatpush1.xpose.msra.mxu0 0.0
    %936 = vmatprep.subr.mxu0 0.0
    %937 = vmatpush1.xpose.msra.mxu0 0.0
    %938 = vmatprep.subr.mxu0 0.0
    %939 = vmatpush1.xpose.msra.mxu0 0.0
    %940 = vmatprep.subr.mxu0 0.0
    %941 = vmatpush1.xpose.msra.mxu0 0.0
    %942 = vmatprep.subr.mxu0 0.0
    %943 = vmatpush1.xpose.msra.mxu0 0.0
    %944 = vmatprep.subr.mxu0 0.0
    %945 = vmatpush1.xpose.msra.mxu0 0.0
    %946 = vmatprep.subr.mxu0 0.0
    %947 = vmatpush1.xpose.msra.mxu0 0.0
    %948 = vmatprep.subr.mxu0 0.0
    %949 = vmatpush1.xpose.msra.mxu0 0.0
    %950 = vmatprep.subr.mxu0 0.0
    %951 = vmatpush1.xpose.msra.mxu0 0.0
    %952 = vmatprep.subr.mxu0 0.0
    %953 = vmatpush1.xpose.msra.mxu0 0.0
    %954 = vmatprep.subr.mxu0 0.0
    %955 = vmatpush1.xpose.msra.mxu0 0.0
    %956 = vmatprep.subr.mxu0 0.0
    %957 = vmatpush1.xpose.msra.mxu0 0.0
    %958 = vmatprep.subr.mxu0 0.0
    %959 = vmatpush1.xpose.msra.mxu0 0.0
    %960 = vmatprep.subr.mxu0 0.0
    %961 = vmatpush1.xpose.msra.mxu0 0.0
    %962 = vmatprep.subr.mxu0 0.0
    %963 = vmatpush1.xpose.msra.mxu0 0.0
    %964 = vmatprep.subr.mxu0 0.0
    %965 = vmatpush1.xpose.msra.mxu0 0.0
    %966 = vmatprep.subr.mxu0 0.0
    %967 = vmatpush1.xpose.msra.mxu0 0.0
    %968 = vmatprep.subr.mxu0 0.0
    %969 = vmatpush1.xpose.msra.mxu0 0.0
    %970 = vmatprep.subr.mxu0 0.0
    %971 = vmatpush1.xpose.msra.mxu0 0.0
    %972 = vmatprep.mubr.f32.mxu0 0.0
    %973 = vmatmul.mubr.f32.gmra.mrb[0].mxu0 %v900
    %v974 = vpop.f32.mrb[0].mxu0
    %v975 = vadd.f32 0.0, %v974
    %v976 = vpop.f32.mrb[0].mxu0
    %977 = vmatprep.mubr.f32.mxu0 0.0
    %978 = vmatmul.mubr.f32.gmra.mrb[0].mxu0 %v902
    %v979 = vpop.f32.mrb[0].mxu0
    %v980 = vadd.f32 0.0, %v979
    %v981 = vpop.f32.mrb[0].mxu0
    %982 = vdwg.mxu0
    %vm983 = vcmask 130048
    %v984 = vsel %vm983, %v366, -inf
    %985 = vmax.xlane.f32.xlu0 %v984
    %v986 = vpop.xlane.xlu0 %985
    %v987 = vsel %vm983, %v371, -inf
    %988 = vmax.xlane.f32.xlu0 %v987
    %v989 = vpop.xlane.xlu0 %988
    %v990 = vsel %vm983, %v453, -inf
    %991 = vmax.xlane.f32.xlu0 %v990
    %v992 = vpop.xlane.xlu0 %991
    %v993 = vsel %vm983, %v458, -inf
    %994 = vmax.xlane.f32.xlu0 %v993
    %v995 = vpop.xlane.xlu0 %994
    %v996 = vsel %vm983, %v540, -inf
    %997 = vmax.xlane.f32.xlu0 %v996
    %v998 = vpop.xlane.xlu0 %997
    %v999 = vsel %vm983, %v545, -inf
    %1000 = vmax.xlane.f32.xlu0 %v999
    %v1001 = vpop.xlane.xlu0 %1000
    %v1002 = vsel %vm983, %v627, -inf
    %1003 = vmax.xlane.f32.xlu0 %v1002
    %v1004 = vpop.xlane.xlu0 %1003
    %v1005 = vsel %vm983, %v632, -inf
    %1006 = vmax.xlane.f32.xlu0 %v1005
    %v1007 = vpop.xlane.xlu0 %1006
    %v1008 = vsel %vm983, %v714, -inf
    %1009 = vmax.xlane.f32.xlu0 %v1008
    %v1010 = vpop.xlane.xlu0 %1009
    %v1011 = vsel %vm983, %v719, -inf
    %1012 = vmax.xlane.f32.xlu0 %v1011
    %v1013 = vpop.xlane.xlu0 %1012
    %v1014 = vsel %vm983, %v801, -inf
    %1015 = vmax.xlane.f32.xlu0 %v1014
    %v1016 = vpop.xlane.xlu0 %1015
    %v1017 = vsel %vm983, %v806, -inf
    %1018 = vmax.xlane.f32.xlu0 %v1017
    %v1019 = vpop.xlane.xlu0 %1018
    %v1020 = vsel %vm983, %v888, -inf
    %1021 = vmax.xlane.f32.xlu0 %v1020
    %v1022 = vpop.xlane.xlu0 %1021
    %v1023 = vsel %vm983, %v893, -inf
    %1024 = vmax.xlane.f32.xlu0 %v1023
    %v1025 = vpop.xlane.xlu0 %1024
    %v1026 = vsel %vm983, %v975, -inf
    %1027 = vmax.xlane.f32.xlu0 %v1026
    %v1028 = vpop.xlane.xlu0 %1027
    %v1029 = vsel %vm983, %v980, -inf
    %1030 = vmax.xlane.f32.xlu0 %v1029
    %v1031 = vpop.xlane.xlu0 %1030
    %v1032 = vsub.f32 %v366, %v986
    %v1033 = vsub.f32 %v371, %v989
    %v1034 = vsub.f32 %v453, %v992
    %v1035 = vsub.f32 %v458, %v995
    %v1036 = vsub.f32 %v540, %v998
    %v1037 = vsub.f32 %v545, %v1001
    %v1038 = vsub.f32 %v627, %v1004
    %v1039 = vsub.f32 %v632, %v1007
    %v1040 = vsub.f32 %v714, %v1010
    %v1041 = vsub.f32 %v719, %v1013
    %v1042 = vsub.f32 %v801, %v1016
    %v1043 = vsub.f32 %v806, %v1019
    %v1044 = vsub.f32 %v888, %v1022
    %v1045 = vsub.f32 %v893, %v1025
    %v1046 = vsub.f32 %v975, %v1028
    %v1047 = vsub.f32 %v980, %v1031
    %v1048 = vmul.f32 %v1032, 1.442695
    %v1049 = vpow.pop %v1048
    %v1050 = vmul.f32 %v1033, 1.442695
    %v1051 = vpow.pop %v1050
    %v1052 = vmul.f32 %v1034, 1.442695
    %v1053 = vpow.pop %v1052
    %v1054 = vmul.f32 %v1035, 1.442695
    %v1055 = vpow.pop %v1054
    %v1056 = vmul.f32 %v1036, 1.442695
    %v1057 = vpow.pop %v1056
    %v1058 = vmul.f32 %v1037, 1.442695
    %v1059 = vpow.pop %v1058
    %v1060 = vmul.f32 %v1038, 1.442695
    %v1061 = vpow.pop %v1060
    %v1062 = vmul.f32 %v1039, 1.442695
    %v1063 = vpow.pop %v1062
    %v1064 = vmul.f32 %v1040, 1.442695
    %v1065 = vpow.pop %v1064
    %v1066 = vmul.f32 %v1041, 1.442695
    %v1067 = vpow.pop %v1066
    %v1068 = vmul.f32 %v1042, 1.442695
    %v1069 = vpow.pop %v1068
    %v1070 = vmul.f32 %v1043, 1.442695
    %v1071 = vpow.pop %v1070
    %v1072 = vmul.f32 %v1044, 1.442695
    %v1073 = vpow.pop %v1072
    %v1074 = vmul.f32 %v1045, 1.442695
    %v1075 = vpow.pop %v1074
    %v1076 = vmul.f32 %v1046, 1.442695
    %v1077 = vpow.pop %v1076
    %v1078 = vmul.f32 %v1047, 1.442695
    %v1079 = vpow.pop %v1078
    %v1080 = vsel %vm983, %v1049, 0.0
    %1081 = vadd.xlane.f32.xlu0 %v1080
    %v1082 = vpop.xlane.xlu0 %1081
    %v1083 = vsel %vm983, %v1051, 0.0
    %1084 = vadd.xlane.f32.xlu0 %v1083
    %v1085 = vpop.xlane.xlu0 %1084
    %v1086 = vsel %vm983, %v1053, 0.0
    %1087 = vadd.xlane.f32.xlu0 %v1086
    %v1088 = vpop.xlane.xlu0 %1087
    %v1089 = vsel %vm983, %v1055, 0.0
    %1090 = vadd.xlane.f32.xlu0 %v1089
    %v1091 = vpop.xlane.xlu0 %1090
    %v1092 = vsel %vm983, %v1057, 0.0
    %1093 = vadd.xlane.f32.xlu0 %v1092
    %v1094 = vpop.xlane.xlu0 %1093
    %v1095 = vsel %vm983, %v1059, 0.0
    %1096 = vadd.xlane.f32.xlu0 %v1095
    %v1097 = vpop.xlane.xlu0 %1096
    %v1098 = vsel %vm983, %v1061, 0.0
    %1099 = vadd.xlane.f32.xlu0 %v1098
    %v1100 = vpop.xlane.xlu0 %1099
    %v1101 = vsel %vm983, %v1063, 0.0
    %1102 = vadd.xlane.f32.xlu0 %v1101
    %v1103 = vpop.xlane.xlu0 %1102
    %v1104 = vsel %vm983, %v1065, 0.0
    %1105 = vadd.xlane.f32.xlu0 %v1104
    %v1106 = vpop.xlane.xlu0 %1105
    %v1107 = vsel %vm983, %v1067, 0.0
    %1108 = vadd.xlane.f32.xlu0 %v1107
    %v1109 = vpop.xlane.xlu0 %1108
    %v1110 = vsel %vm983, %v1069, 0.0
    %1111 = vadd.xlane.f32.xlu0 %v1110
    %v1112 = vpop.xlane.xlu0 %1111
    %v1113 = vsel %vm983, %v1071, 0.0
    %1114 = vadd.xlane.f32.xlu0 %v1113
    %v1115 = vpop.xlane.xlu0 %1114
    %v1116 = vsel %vm983, %v1073, 0.0
    %1117 = vadd.xlane.f32.xlu0 %v1116
    %v1118 = vpop.xlane.xlu0 %1117
    %v1119 = vsel %vm983, %v1075, 0.0
    %1120 = vadd.xlane.f32.xlu0 %v1119
    %v1121 = vpop.xlane.xlu0 %1120
    %v1122 = vsel %vm983, %v1077, 0.0
    %1123 = vadd.xlane.f32.xlu0 %v1122
    %v1124 = vpop.xlane.xlu0 %1123
    %v1125 = vsel %vm983, %v1079, 0.0
    %1126 = vadd.xlane.f32.xlu0 %v1125
    %v1127 = vpop.xlane.xlu0 %1126
    %v1128 = vrcp.pop %v1082
    %v1129 = vrcp.pop %v1085
    %v1130 = vrcp.pop %v1088
    %v1131 = vrcp.pop %v1091
    %v1132 = vrcp.pop %v1094
    %v1133 = vrcp.pop %v1097
    %v1134 = vrcp.pop %v1100
    %v1135 = vrcp.pop %v1103
    %v1136 = vrcp.pop %v1106
    %v1137 = vrcp.pop %v1109
    %v1138 = vrcp.pop %v1112
    %v1139 = vrcp.pop %v1115
    %v1140 = vrcp.pop %v1118
    %v1141 = vrcp.pop %v1121
    %v1142 = vrcp.pop %v1124
    %v1143 = vrcp.pop %v1127
    %v1144 = vmul.f32 %v1049, %v1128
    %v1145 = vmul.f32 %v1051, %v1129
    %v1146 = vmul.f32 %v1053, %v1130
    %v1147 = vmul.f32 %v1055, %v1131
    %v1148 = vmul.f32 %v1057, %v1132
    %v1149 = vmul.f32 %v1059, %v1133
    %v1150 = vmul.f32 %v1061, %v1134
    %v1151 = vmul.f32 %v1063, %v1135
    %v1152 = vmul.f32 %v1065, %v1136
    %v1153 = vmul.f32 %v1067, %v1137
    %v1154 = vmul.f32 %v1069, %v1138
    %v1155 = vmul.f32 %v1071, %v1139
    %v1156 = vmul.f32 %v1073, %v1140
    %v1157 = vmul.f32 %v1075, %v1141
    %v1158 = vmul.f32 %v1077, %v1142
    %v1159 = vmul.f32 %v1079, %v1143
    %1160 = vrot.lane.b32.xlu0 %v240, 64
    %v1161 = vpop.permute.xlu0 %1160
    %1162 = vrot.lane.b32.xlu0 %v245, 64
    %v1163 = vpop.permute.xlu0 %1162
    %v1167 = vsel %vm983, %v1144, 0
    %v1170 = vsel %vm983, %v1145, 0
    %1172 = vmatprep.subr.mxu0 0.0
    %1173 = vmatpush1.msra.mxu0 %v1161
    %1174 = vmatprep.subr.mxu0 0.0
    %1175 = vmatpush1.msra.mxu0 %v1163
    %1176 = vmatprep.subr.mxu0 0.0
    %1177 = vmatpush1.msra.mxu0 0.0
    %1178 = vmatprep.subr.mxu0 0.0
    %1179 = vmatpush1.msra.mxu0 0.0
    %1180 = vmatprep.subr.mxu0 0.0
    %1181 = vmatpush1.msra.mxu0 0.0
    %1182 = vmatprep.subr.mxu0 0.0
    %1183 = vmatpush1.msra.mxu0 0.0
    %1184 = vmatprep.subr.mxu0 0.0
    %1185 = vmatpush1.msra.mxu0 0.0
    %1186 = vmatprep.subr.mxu0 0.0
    %1187 = vmatpush1.msra.mxu0 0.0
    %1188 = vmatprep.subr.mxu0 0.0
    %1189 = vmatpush1.msra.mxu0 0.0
    %1190 = vmatprep.subr.mxu0 0.0
    %1191 = vmatpush1.msra.mxu0 0.0
    %1192 = vmatprep.subr.mxu0 0.0
    %1193 = vmatpush1.msra.mxu0 0.0
    %1194 = vmatprep.subr.mxu0 0.0
    %1195 = vmatpush1.msra.mxu0 0.0
    %1196 = vmatprep.subr.mxu0 0.0
    %1197 = vmatpush1.msra.mxu0 0.0
    %1198 = vmatprep.subr.mxu0 0.0
    %1199 = vmatpush1.msra.mxu0 0.0
    %1200 = vmatprep.subr.mxu0 0.0
    %1201 = vmatpush1.msra.mxu0 0.0
    %1202 = vmatprep.subr.mxu0 0.0
    %1203 = vmatpush1.msra.mxu0 0.0
    %1204 = vmatprep.subr.mxu0 0.0
    %1205 = vmatpush1.msra.mxu0 0.0
    %1206 = vmatprep.subr.mxu0 0.0
    %1207 = vmatpush1.msra.mxu0 0.0
    %1208 = vmatprep.subr.mxu0 0.0
    %1209 = vmatpush1.msra.mxu0 0.0
    %1210 = vmatprep.subr.mxu0 0.0
    %1211 = vmatpush1.msra.mxu0 0.0
    %1212 = vmatprep.subr.mxu0 0.0
    %1213 = vmatpush1.msra.mxu0 0.0
    %1214 = vmatprep.subr.mxu0 0.0
    %1215 = vmatpush1.msra.mxu0 0.0
    %1216 = vmatprep.subr.mxu0 0.0
    %1217 = vmatpush1.msra.mxu0 0.0
    %1218 = vmatprep.subr.mxu0 0.0
    %1219 = vmatpush1.msra.mxu0 0.0
    %1220 = vmatprep.subr.mxu0 0.0
    %1221 = vmatpush1.msra.mxu0 0.0
    %1222 = vmatprep.subr.mxu0 0.0
    %1223 = vmatpush1.msra.mxu0 0.0
    %1224 = vmatprep.subr.mxu0 0.0
    %1225 = vmatpush1.msra.mxu0 0.0
    %1226 = vmatprep.subr.mxu0 0.0
    %1227 = vmatpush1.msra.mxu0 0.0
    %1228 = vmatprep.subr.mxu0 0.0
    %1229 = vmatpush1.msra.mxu0 0.0
    %1230 = vmatprep.subr.mxu0 0.0
    %1231 = vmatpush1.msra.mxu0 0.0
    %1232 = vmatprep.subr.mxu0 0.0
    %1233 = vmatpush1.msra.mxu0 0.0
    %1234 = vmatprep.subr.mxu0 0.0
    %1235 = vmatpush1.msra.mxu0 0.0
    %1236 = vmatprep.mubr.f32.mxu0 0.0
    %1237 = vmatmul.mubr.f32.gmra.mrb[0].mxu0 %v1167
    %v1238 = vpop.f32.mrb[0].mxu0
    %v1239 = vadd.f32 0.0, %v1238
    %v1240 = vpop.f32.mrb[0].mxu0
    %1241 = vmatprep.mubr.f32.mxu0 0.0
    %1242 = vmatmul.mubr.f32.gmra.mrb[0].mxu0 %v1170
    %v1243 = vpop.f32.mrb[0].mxu0
    %v1244 = vadd.f32 0.0, %v1243
    %v1245 = vpop.f32.mrb[0].mxu0
    %1246 = vdwg.mxu0
    %1247 = vrot.lane.b32.xlu0 %v250, 64
    %v1248 = vpop.permute.xlu0 %1247
    %1249 = vrot.lane.b32.xlu0 %v255, 64
    %v1250 = vpop.permute.xlu0 %1249
    %v1254 = vsel %vm983, %v1146, 0
    %v1257 = vsel %vm983, %v1147, 0
    %1259 = vmatprep.subr.mxu0 0.0
    %1260 = vmatpush1.msra.mxu0 %v1248
    %1261 = vmatprep.subr.mxu0 0.0
    %1262 = vmatpush1.msra.mxu0 %v1250
    %1263 = vmatprep.subr.mxu0 0.0
    %1264 = vmatpush1.msra.mxu0 0.0
    %1265 = vmatprep.subr.mxu0 0.0
    %1266 = vmatpush1.msra.mxu0 0.0
    %1267 = vmatprep.subr.mxu0 0.0
    %1268 = vmatpush1.msra.mxu0 0.0
    %1269 = vmatprep.subr.mxu0 0.0
    %1270 = vmatpush1.msra.mxu0 0.0
    %1271 = vmatprep.subr.mxu0 0.0
    %1272 = vmatpush1.msra.mxu0 0.0
    %1273 = vmatprep.subr.mxu0 0.0
    %1274 = vmatpush1.msra.mxu0 0.0
    %1275 = vmatprep.subr.mxu0 0.0
    %1276 = vmatpush1.msra.mxu0 0.0
    %1277 = vmatprep.subr.mxu0 0.0
    %1278 = vmatpush1.msra.mxu0 0.0
    %1279 = vmatprep.subr.mxu0 0.0
    %1280 = vmatpush1.msra.mxu0 0.0
    %1281 = vmatprep.subr.mxu0 0.0
    %1282 = vmatpush1.msra.mxu0 0.0
    %1283 = vmatprep.subr.mxu0 0.0
    %1284 = vmatpush1.msra.mxu0 0.0
    %1285 = vmatprep.subr.mxu0 0.0
    %1286 = vmatpush1.msra.mxu0 0.0
    %1287 = vmatprep.subr.mxu0 0.0
    %1288 = vmatpush1.msra.mxu0 0.0
    %1289 = vmatprep.subr.mxu0 0.0
    %1290 = vmatpush1.msra.mxu0 0.0
    %1291 = vmatprep.subr.mxu0 0.0
    %1292 = vmatpush1.msra.mxu0 0.0
    %1293 = vmatprep.subr.mxu0 0.0
    %1294 = vmatpush1.msra.mxu0 0.0
    %1295 = vmatprep.subr.mxu0 0.0
    %1296 = vmatpush1.msra.mxu0 0.0
    %1297 = vmatprep.subr.mxu0 0.0
    %1298 = vmatpush1.msra.mxu0 0.0
    %1299 = vmatprep.subr.mxu0 0.0
    %1300 = vmatpush1.msra.mxu0 0.0
    %1301 = vmatprep.subr.mxu0 0.0
    %1302 = vmatpush1.msra.mxu0 0.0
    %1303 = vmatprep.subr.mxu0 0.0
    %1304 = vmatpush1.msra.mxu0 0.0
    %1305 = vmatprep.subr.mxu0 0.0
    %1306 = vmatpush1.msra.mxu0 0.0
    %1307 = vmatprep.subr.mxu0 0.0
    %1308 = vmatpush1.msra.mxu0 0.0
    %1309 = vmatprep.subr.mxu0 0.0
    %1310 = vmatpush1.msra.mxu0 0.0
    %1311 = vmatprep.subr.mxu0 0.0
    %1312 = vmatpush1.msra.mxu0 0.0
    %1313 = vmatprep.subr.mxu0 0.0
    %1314 = vmatpush1.msra.mxu0 0.0
    %1315 = vmatprep.subr.mxu0 0.0
    %1316 = vmatpush1.msra.mxu0 0.0
    %1317 = vmatprep.subr.mxu0 0.0
    %1318 = vmatpush1.msra.mxu0 0.0
    %1319 = vmatprep.subr.mxu0 0.0
    %1320 = vmatpush1.msra.mxu0 0.0
    %1321 = vmatprep.subr.mxu0 0.0
    %1322 = vmatpush1.msra.mxu0 0.0
    %1323 = vmatprep.mubr.f32.mxu0 0.0
    %1324 = vmatmul.mubr.f32.gmra.mrb[0].mxu0 %v1254
    %v1325 = vpop.f32.mrb[0].mxu0
    %v1326 = vadd.f32 0.0, %v1325
    %v1327 = vpop.f32.mrb[0].mxu0
    %1328 = vmatprep.mubr.f32.mxu0 0.0
    %1329 = vmatmul.mubr.f32.gmra.mrb[0].mxu0 %v1257
    %v1330 = vpop.f32.mrb[0].mxu0
    %v1331 = vadd.f32 0.0, %v1330
    %v1332 = vpop.f32.mrb[0].mxu0
    %1333 = vdwg.mxu0
    %1334 = vrot.lane.b32.xlu0 %v263, 64
    %v1335 = vpop.permute.xlu0 %1334
    %1336 = vrot.lane.b32.xlu0 %v265, 64
    %v1337 = vpop.permute.xlu0 %1336
    %v1341 = vsel %vm983, %v1148, 0
    %v1344 = vsel %vm983, %v1149, 0
    %1346 = vmatprep.subr.mxu0 0.0
    %1347 = vmatpush1.msra.mxu0 %v1335
    %1348 = vmatprep.subr.mxu0 0.0
    %1349 = vmatpush1.msra.mxu0 %v1337
    %1350 = vmatprep.subr.mxu0 0.0
    %1351 = vmatpush1.msra.mxu0 0.0
    %1352 = vmatprep.subr.mxu0 0.0
    %1353 = vmatpush1.msra.mxu0 0.0
    %1354 = vmatprep.subr.mxu0 0.0
    %1355 = vmatpush1.msra.mxu0 0.0
    %1356 = vmatprep.subr.mxu0 0.0
    %1357 = vmatpush1.msra.mxu0 0.0
    %1358 = vmatprep.subr.mxu0 0.0
    %1359 = vmatpush1.msra.mxu0 0.0
    %1360 = vmatprep.subr.mxu0 0.0
    %1361 = vmatpush1.msra.mxu0 0.0
    %1362 = vmatprep.subr.mxu0 0.0
    %1363 = vmatpush1.msra.mxu0 0.0
    %1364 = vmatprep.subr.mxu0 0.0
    %1365 = vmatpush1.msra.mxu0 0.0
    %1366 = vmatprep.subr.mxu0 0.0
    %1367 = vmatpush1.msra.mxu0 0.0
    %1368 = vmatprep.subr.mxu0 0.0
    %1369 = vmatpush1.msra.mxu0 0.0
    %1370 = vmatprep.subr.mxu0 0.0
    %1371 = vmatpush1.msra.mxu0 0.0
    %1372 = vmatprep.subr.mxu0 0.0
    %1373 = vmatpush1.msra.mxu0 0.0
    %1374 = vmatprep.subr.mxu0 0.0
    %1375 = vmatpush1.msra.mxu0 0.0
    %1376 = vmatprep.subr.mxu0 0.0
    %1377 = vmatpush1.msra.mxu0 0.0
    %1378 = vmatprep.subr.mxu0 0.0
    %1379 = vmatpush1.msra.mxu0 0.0
    %1380 = vmatprep.subr.mxu0 0.0
    %1381 = vmatpush1.msra.mxu0 0.0
    %1382 = vmatprep.subr.mxu0 0.0
    %1383 = vmatpush1.msra.mxu0 0.0
    %1384 = vmatprep.subr.mxu0 0.0
    %1385 = vmatpush1.msra.mxu0 0.0
    %1386 = vmatprep.subr.mxu0 0.0
    %1387 = vmatpush1.msra.mxu0 0.0
    %1388 = vmatprep.subr.mxu0 0.0
    %1389 = vmatpush1.msra.mxu0 0.0
    %1390 = vmatprep.subr.mxu0 0.0
    %1391 = vmatpush1.msra.mxu0 0.0
    %1392 = vmatprep.subr.mxu0 0.0
    %1393 = vmatpush1.msra.mxu0 0.0
    %1394 = vmatprep.subr.mxu0 0.0
    %1395 = vmatpush1.msra.mxu0 0.0
    %1396 = vmatprep.subr.mxu0 0.0
    %1397 = vmatpush1.msra.mxu0 0.0
    %1398 = vmatprep.subr.mxu0 0.0
    %1399 = vmatpush1.msra.mxu0 0.0
    %1400 = vmatprep.subr.mxu0 0.0
    %1401 = vmatpush1.msra.mxu0 0.0
    %1402 = vmatprep.subr.mxu0 0.0
    %1403 = vmatpush1.msra.mxu0 0.0
    %1404 = vmatprep.subr.mxu0 0.0
    %1405 = vmatpush1.msra.mxu0 0.0
    %1406 = vmatprep.subr.mxu0 0.0
    %1407 = vmatpush1.msra.mxu0 0.0
    %1408 = vmatprep.subr.mxu0 0.0
    %1409 = vmatpush1.msra.mxu0 0.0
    %1410 = vmatprep.mubr.f32.mxu0 0.0
    %1411 = vmatmul.mubr.f32.gmra.mrb[0].mxu0 %v1341
    %v1412 = vpop.f32.mrb[0].mxu0
    %v1413 = vadd.f32 0.0, %v1412
    %v1414 = vpop.f32.mrb[0].mxu0
    %1415 = vmatprep.mubr.f32.mxu0 0.0
    %1416 = vmatmul.mubr.f32.gmra.mrb[0].mxu0 %v1344
    %v1417 = vpop.f32.mrb[0].mxu0
    %v1418 = vadd.f32 0.0, %v1417
    %v1419 = vpop.f32.mrb[0].mxu0
    %1420 = vdwg.mxu0
    %1421 = vrot.lane.b32.xlu0 %v267, 64
    %v1422 = vpop.permute.xlu0 %1421
    %1423 = vrot.lane.b32.xlu0 %v269, 64
    %v1424 = vpop.permute.xlu0 %1423
    %v1428 = vsel %vm983, %v1150, 0
    %v1431 = vsel %vm983, %v1151, 0
    %1433 = vmatprep.subr.mxu0 0.0
    %1434 = vmatpush1.msra.mxu0 %v1422
    %1435 = vmatprep.subr.mxu0 0.0
    %1436 = vmatpush1.msra.mxu0 %v1424
    %1437 = vmatprep.subr.mxu0 0.0
    %1438 = vmatpush1.msra.mxu0 0.0
    %1439 = vmatprep.subr.mxu0 0.0
    %1440 = vmatpush1.msra.mxu0 0.0
    %1441 = vmatprep.subr.mxu0 0.0
    %1442 = vmatpush1.msra.mxu0 0.0
    %1443 = vmatprep.subr.mxu0 0.0
    %1444 = vmatpush1.msra.mxu0 0.0
    %1445 = vmatprep.subr.mxu0 0.0
    %1446 = vmatpush1.msra.mxu0 0.0
    %1447 = vmatprep.subr.mxu0 0.0
    %1448 = vmatpush1.msra.mxu0 0.0
    %1449 = vmatprep.subr.mxu0 0.0
    %1450 = vmatpush1.msra.mxu0 0.0
    %1451 = vmatprep.subr.mxu0 0.0
    %1452 = vmatpush1.msra.mxu0 0.0
    %1453 = vmatprep.subr.mxu0 0.0
    %1454 = vmatpush1.msra.mxu0 0.0
    %1455 = vmatprep.subr.mxu0 0.0
    %1456 = vmatpush1.msra.mxu0 0.0
    %1457 = vmatprep.subr.mxu0 0.0
    %1458 = vmatpush1.msra.mxu0 0.0
    %1459 = vmatprep.subr.mxu0 0.0
    %1460 = vmatpush1.msra.mxu0 0.0
    %1461 = vmatprep.subr.mxu0 0.0
    %1462 = vmatpush1.msra.mxu0 0.0
    %1463 = vmatprep.subr.mxu0 0.0
    %1464 = vmatpush1.msra.mxu0 0.0
    %1465 = vmatprep.subr.mxu0 0.0
    %1466 = vmatpush1.msra.mxu0 0.0
    %1467 = vmatprep.subr.mxu0 0.0
    %1468 = vmatpush1.msra.mxu0 0.0
    %1469 = vmatprep.subr.mxu0 0.0
    %1470 = vmatpush1.msra.mxu0 0.0
    %1471 = vmatprep.subr.mxu0 0.0
    %1472 = vmatpush1.msra.mxu0 0.0
    %1473 = vmatprep.subr.mxu0 0.0
    %1474 = vmatpush1.msra.mxu0 0.0
    %1475 = vmatprep.subr.mxu0 0.0
    %1476 = vmatpush1.msra.mxu0 0.0
    %1477 = vmatprep.subr.mxu0 0.0
    %1478 = vmatpush1.msra.mxu0 0.0
    %1479 = vmatprep.subr.mxu0 0.0
    %1480 = vmatpush1.msra.mxu0 0.0
    %1481 = vmatprep.subr.mxu0 0.0
    %1482 = vmatpush1.msra.mxu0 0.0
    %1483 = vmatprep.subr.mxu0 0.0
    %1484 = vmatpush1.msra.mxu0 0.0
    %1485 = vmatprep.subr.mxu0 0.0
    %1486 = vmatpush1.msra.mxu0 0.0
    %1487 = vmatprep.subr.mxu0 0.0
    %1488 = vmatpush1.msra.mxu0 0.0
    %1489 = vmatprep.subr.mxu0 0.0
    %1490 = vmatpush1.msra.mxu0 0.0
    %1491 = vmatprep.subr.mxu0 0.0
    %1492 = vmatpush1.msra.mxu0 0.0
    %1493 = vmatprep.subr.mxu0 0.0
    %1494 = vmatpush1.msra.mxu0 0.0
    %1495 = vmatprep.subr.mxu0 0.0
    %1496 = vmatpush1.msra.mxu0 0.0
    %1497 = vmatprep.mubr.f32.mxu0 0.0
    %1498 = vmatmul.mubr.f32.gmra.mrb[0].mxu0 %v1428
    %v1499 = vpop.f32.mrb[0].mxu0
    %v1500 = vadd.f32 0.0, %v1499
    %v1501 = vpop.f32.mrb[0].mxu0
    %1502 = vmatprep.mubr.f32.mxu0 0.0
    %1503 = vmatmul.mubr.f32.gmra.mrb[0].mxu0 %v1431
    %v1504 = vpop.f32.mrb[0].mxu0
    %v1505 = vadd.f32 0.0, %v1504
    %v1506 = vpop.f32.mrb[0].mxu0
    %1507 = vdwg.mxu0
    %1508 = vrot.lane.b32.xlu0 %v271, 64
    %v1509 = vpop.permute.xlu0 %1508
    %1510 = vrot.lane.b32.xlu0 %v273, 64
    %v1511 = vpop.permute.xlu0 %1510
    %v1515 = vsel %vm983, %v1152, 0
    %v1518 = vsel %vm983, %v1153, 0
    %1520 = vmatprep.subr.mxu0 0.0
    %1521 = vmatpush1.msra.mxu0 %v1509
    %1522 = vmatprep.subr.mxu0 0.0
    %1523 = vmatpush1.msra.mxu0 %v1511
    %1524 = vmatprep.subr.mxu0 0.0
    %1525 = vmatpush1.msra.mxu0 0.0
    %1526 = vmatprep.subr.mxu0 0.0
    %1527 = vmatpush1.msra.mxu0 0.0
    %1528 = vmatprep.subr.mxu0 0.0
    %1529 = vmatpush1.msra.mxu0 0.0
    %1530 = vmatprep.subr.mxu0 0.0
    %1531 = vmatpush1.msra.mxu0 0.0
    %1532 = vmatprep.subr.mxu0 0.0
    %1533 = vmatpush1.msra.mxu0 0.0
    %1534 = vmatprep.subr.mxu0 0.0
    %1535 = vmatpush1.msra.mxu0 0.0
    %1536 = vmatprep.subr.mxu0 0.0
    %1537 = vmatpush1.msra.mxu0 0.0
    %1538 = vmatprep.subr.mxu0 0.0
    %1539 = vmatpush1.msra.mxu0 0.0
    %1540 = vmatprep.subr.mxu0 0.0
    %1541 = vmatpush1.msra.mxu0 0.0
    %1542 = vmatprep.subr.mxu0 0.0
    %1543 = vmatpush1.msra.mxu0 0.0
    %1544 = vmatprep.subr.mxu0 0.0
    %1545 = vmatpush1.msra.mxu0 0.0
    %1546 = vmatprep.subr.mxu0 0.0
    %1547 = vmatpush1.msra.mxu0 0.0
    %1548 = vmatprep.subr.mxu0 0.0
    %1549 = vmatpush1.msra.mxu0 0.0
    %1550 = vmatprep.subr.mxu0 0.0
    %1551 = vmatpush1.msra.mxu0 0.0
    %1552 = vmatprep.subr.mxu0 0.0
    %1553 = vmatpush1.msra.mxu0 0.0
    %1554 = vmatprep.subr.mxu0 0.0
    %1555 = vmatpush1.msra.mxu0 0.0
    %1556 = vmatprep.subr.mxu0 0.0
    %1557 = vmatpush1.msra.mxu0 0.0
    %1558 = vmatprep.subr.mxu0 0.0
    %1559 = vmatpush1.msra.mxu0 0.0
    %1560 = vmatprep.subr.mxu0 0.0
    %1561 = vmatpush1.msra.mxu0 0.0
    %1562 = vmatprep.subr.mxu0 0.0
    %1563 = vmatpush1.msra.mxu0 0.0
    %1564 = vmatprep.subr.mxu0 0.0
    %1565 = vmatpush1.msra.mxu0 0.0
    %1566 = vmatprep.subr.mxu0 0.0
    %1567 = vmatpush1.msra.mxu0 0.0
    %1568 = vmatprep.subr.mxu0 0.0
    %1569 = vmatpush1.msra.mxu0 0.0
    %1570 = vmatprep.subr.mxu0 0.0
    %1571 = vmatpush1.msra.mxu0 0.0
    %1572 = vmatprep.subr.mxu0 0.0
    %1573 = vmatpush1.msra.mxu0 0.0
    %1574 = vmatprep.subr.mxu0 0.0
    %1575 = vmatpush1.msra.mxu0 0.0
    %1576 = vmatprep.subr.mxu0 0.0
    %1577 = vmatpush1.msra.mxu0 0.0
    %1578 = vmatprep.subr.mxu0 0.0
    %1579 = vmatpush1.msra.mxu0 0.0
    %1580 = vmatprep.subr.mxu0 0.0
    %1581 = vmatpush1.msra.mxu0 0.0
    %1582 = vmatprep.subr.mxu0 0.0
    %1583 = vmatpush1.msra.mxu0 0.0
    %1584 = vmatprep.mubr.f32.mxu0 0.0
    %1585 = vmatmul.mubr.f32.gmra.mrb[0].mxu0 %v1515
    %v1586 = vpop.f32.mrb[0].mxu0
    %v1587 = vadd.f32 0.0, %v1586
    %v1588 = vpop.f32.mrb[0].mxu0
    %1589 = vmatprep.mubr.f32.mxu0 0.0
    %1590 = vmatmul.mubr.f32.gmra.mrb[0].mxu0 %v1518
    %v1591 = vpop.f32.mrb[0].mxu0
    %v1592 = vadd.f32 0.0, %v1591
    %v1593 = vpop.f32.mrb[0].mxu0
    %1594 = vdwg.mxu0
    %1595 = vrot.lane.b32.xlu0 %v275, 64
    %v1596 = vpop.permute.xlu0 %1595
    %1597 = vrot.lane.b32.xlu0 %v277, 64
    %v1598 = vpop.permute.xlu0 %1597
    %v1602 = vsel %vm983, %v1154, 0
    %v1605 = vsel %vm983, %v1155, 0
    %1607 = vmatprep.subr.mxu0 0.0
    %1608 = vmatpush1.msra.mxu0 %v1596
    %1609 = vmatprep.subr.mxu0 0.0
    %1610 = vmatpush1.msra.mxu0 %v1598
    %1611 = vmatprep.subr.mxu0 0.0
    %1612 = vmatpush1.msra.mxu0 0.0
    %1613 = vmatprep.subr.mxu0 0.0
    %1614 = vmatpush1.msra.mxu0 0.0
    %1615 = vmatprep.subr.mxu0 0.0
    %1616 = vmatpush1.msra.mxu0 0.0
    %1617 = vmatprep.subr.mxu0 0.0
    %1618 = vmatpush1.msra.mxu0 0.0
    %1619 = vmatprep.subr.mxu0 0.0
    %1620 = vmatpush1.msra.mxu0 0.0
    %1621 = vmatprep.subr.mxu0 0.0
    %1622 = vmatpush1.msra.mxu0 0.0
    %1623 = vmatprep.subr.mxu0 0.0
    %1624 = vmatpush1.msra.mxu0 0.0
    %1625 = vmatprep.subr.mxu0 0.0
    %1626 = vmatpush1.msra.mxu0 0.0
    %1627 = vmatprep.subr.mxu0 0.0
    %1628 = vmatpush1.msra.mxu0 0.0
    %1629 = vmatprep.subr.mxu0 0.0
    %1630 = vmatpush1.msra.mxu0 0.0
    %1631 = vmatprep.subr.mxu0 0.0
    %1632 = vmatpush1.msra.mxu0 0.0
    %1633 = vmatprep.subr.mxu0 0.0
    %1634 = vmatpush1.msra.mxu0 0.0
    %1635 = vmatprep.subr.mxu0 0.0
    %1636 = vmatpush1.msra.mxu0 0.0
    %1637 = vmatprep.subr.mxu0 0.0
    %1638 = vmatpush1.msra.mxu0 0.0
    %1639 = vmatprep.subr.mxu0 0.0
    %1640 = vmatpush1.msra.mxu0 0.0
    %1641 = vmatprep.subr.mxu0 0.0
    %1642 = vmatpush1.msra.mxu0 0.0
    %1643 = vmatprep.subr.mxu0 0.0
    %1644 = vmatpush1.msra.mxu0 0.0
    %1645 = vmatprep.subr.mxu0 0.0
    %1646 = vmatpush1.msra.mxu0 0.0
    %1647 = vmatprep.subr.mxu0 0.0
    %1648 = vmatpush1.msra.mxu0 0.0
    %1649 = vmatprep.subr.mxu0 0.0
    %1650 = vmatpush1.msra.mxu0 0.0
    %1651 = vmatprep.subr.mxu0 0.0
    %1652 = vmatpush1.msra.mxu0 0.0
    %1653 = vmatprep.subr.mxu0 0.0
    %1654 = vmatpush1.msra.mxu0 0.0
    %1655 = vmatprep.subr.mxu0 0.0
    %1656 = vmatpush1.msra.mxu0 0.0
    %1657 = vmatprep.subr.mxu0 0.0
    %1658 = vmatpush1.msra.mxu0 0.0
    %1659 = vmatprep.subr.mxu0 0.0
    %1660 = vmatpush1.msra.mxu0 0.0
    %1661 = vmatprep.subr.mxu0 0.0
    %1662 = vmatpush1.msra.mxu0 0.0
    %1663 = vmatprep.subr.mxu0 0.0
    %1664 = vmatpush1.msra.mxu0 0.0
    %1665 = vmatprep.subr.mxu0 0.0
    %1666 = vmatpush1.msra.mxu0 0.0
    %1667 = vmatprep.subr.mxu0 0.0
    %1668 = vmatpush1.msra.mxu0 0.0
    %1669 = vmatprep.subr.mxu0 0.0
    %1670 = vmatpush1.msra.mxu0 0.0
    %1671 = vmatprep.mubr.f32.mxu0 0.0
    %1672 = vmatmul.mubr.f32.gmra.mrb[0].mxu0 %v1602
    %v1673 = vpop.f32.mrb[0].mxu0
    %v1674 = vadd.f32 0.0, %v1673
    %v1675 = vpop.f32.mrb[0].mxu0
    %1676 = vmatprep.mubr.f32.mxu0 0.0
    %1677 = vmatmul.mubr.f32.gmra.mrb[0].mxu0 %v1605
    %v1678 = vpop.f32.mrb[0].mxu0
    %v1679 = vadd.f32 0.0, %v1678
    %v1680 = vpop.f32.mrb[0].mxu0
    %1681 = vdwg.mxu0
    %1682 = vrot.lane.b32.xlu0 %v279, 64
    %v1683 = vpop.permute.xlu0 %1682
    %1684 = vrot.lane.b32.xlu0 %v281, 64
    %v1685 = vpop.permute.xlu0 %1684
    %v1689 = vsel %vm983, %v1156, 0
    %v1692 = vsel %vm983, %v1157, 0
    %1694 = vmatprep.subr.mxu0 0.0
    %1695 = vmatpush1.msra.mxu0 %v1683
    %1696 = vmatprep.subr.mxu0 0.0
    %1697 = vmatpush1.msra.mxu0 %v1685
    %1698 = vmatprep.subr.mxu0 0.0
    %1699 = vmatpush1.msra.mxu0 0.0
    %1700 = vmatprep.subr.mxu0 0.0
    %1701 = vmatpush1.msra.mxu0 0.0
    %1702 = vmatprep.subr.mxu0 0.0
    %1703 = vmatpush1.msra.mxu0 0.0
    %1704 = vmatprep.subr.mxu0 0.0
    %1705 = vmatpush1.msra.mxu0 0.0
    %1706 = vmatprep.subr.mxu0 0.0
    %1707 = vmatpush1.msra.mxu0 0.0
    %1708 = vmatprep.subr.mxu0 0.0
    %1709 = vmatpush1.msra.mxu0 0.0
    %1710 = vmatprep.subr.mxu0 0.0
    %1711 = vmatpush1.msra.mxu0 0.0
    %1712 = vmatprep.subr.mxu0 0.0
    %1713 = vmatpush1.msra.mxu0 0.0
    %1714 = vmatprep.subr.mxu0 0.0
    %1715 = vmatpush1.msra.mxu0 0.0
    %1716 = vmatprep.subr.mxu0 0.0
    %1717 = vmatpush1.msra.mxu0 0.0
    %1718 = vmatprep.subr.mxu0 0.0
    %1719 = vmatpush1.msra.mxu0 0.0
    %1720 = vmatprep.subr.mxu0 0.0
    %1721 = vmatpush1.msra.mxu0 0.0
    %1722 = vmatprep.subr.mxu0 0.0
    %1723 = vmatpush1.msra.mxu0 0.0
    %1724 = vmatprep.subr.mxu0 0.0
    %1725 = vmatpush1.msra.mxu0 0.0
    %1726 = vmatprep.subr.mxu0 0.0
    %1727 = vmatpush1.msra.mxu0 0.0
    %1728 = vmatprep.subr.mxu0 0.0
    %1729 = vmatpush1.msra.mxu0 0.0
    %1730 = vmatprep.subr.mxu0 0.0
    %1731 = vmatpush1.msra.mxu0 0.0
    %1732 = vmatprep.subr.mxu0 0.0
    %1733 = vmatpush1.msra.mxu0 0.0
    %1734 = vmatprep.subr.mxu0 0.0
    %1735 = vmatpush1.msra.mxu0 0.0
    %1736 = vmatprep.subr.mxu0 0.0
    %1737 = vmatpush1.msra.mxu0 0.0
    %1738 = vmatprep.subr.mxu0 0.0
    %1739 = vmatpush1.msra.mxu0 0.0
    %1740 = vmatprep.subr.mxu0 0.0
    %1741 = vmatpush1.msra.mxu0 0.0
    %1742 = vmatprep.subr.mxu0 0.0
    %1743 = vmatpush1.msra.mxu0 0.0
    %1744 = vmatprep.subr.mxu0 0.0
    %1745 = vmatpush1.msra.mxu0 0.0
    %1746 = vmatprep.subr.mxu0 0.0
    %1747 = vmatpush1.msra.mxu0 0.0
    %1748 = vmatprep.subr.mxu0 0.0
    %1749 = vmatpush1.msra.mxu0 0.0
    %1750 = vmatprep.subr.mxu0 0.0
    %1751 = vmatpush1.msra.mxu0 0.0
    %1752 = vmatprep.subr.mxu0 0.0
    %1753 = vmatpush1.msra.mxu0 0.0
    %1754 = vmatprep.subr.mxu0 0.0
    %1755 = vmatpush1.msra.mxu0 0.0
    %1756 = vmatprep.subr.mxu0 0.0
    %1757 = vmatpush1.msra.mxu0 0.0
    %1758 = vmatprep.mubr.f32.mxu0 0.0
    %1759 = vmatmul.mubr.f32.gmra.mrb[0].mxu0 %v1689
    %v1760 = vpop.f32.mrb[0].mxu0
    %v1761 = vadd.f32 0.0, %v1760
    %v1762 = vpop.f32.mrb[0].mxu0
    %1763 = vmatprep.mubr.f32.mxu0 0.0
    %1764 = vmatmul.mubr.f32.gmra.mrb[0].mxu0 %v1692
    %v1765 = vpop.f32.mrb[0].mxu0
    %v1766 = vadd.f32 0.0, %v1765
    %v1767 = vpop.f32.mrb[0].mxu0
    %1768 = vdwg.mxu0
    %1769 = vrot.lane.b32.xlu0 %v283, 64
    %v1770 = vpop.permute.xlu0 %1769
    %1771 = vrot.lane.b32.xlu0 %v285, 64
    %v1772 = vpop.permute.xlu0 %1771
    %v1776 = vsel %vm983, %v1158, 0
    %v1779 = vsel %vm983, %v1159, 0
    %1781 = vmatprep.subr.mxu0 0.0
    %1782 = vmatpush1.msra.mxu0 %v1770
    %1783 = vmatprep.subr.mxu0 0.0
    %1784 = vmatpush1.msra.mxu0 %v1772
    %1785 = vmatprep.subr.mxu0 0.0
    %1786 = vmatpush1.msra.mxu0 0.0
    %1787 = vmatprep.subr.mxu0 0.0
    %1788 = vmatpush1.msra.mxu0 0.0
    %1789 = vmatprep.subr.mxu0 0.0
    %1790 = vmatpush1.msra.mxu0 0.0
    %1791 = vmatprep.subr.mxu0 0.0
    %1792 = vmatpush1.msra.mxu0 0.0
    %1793 = vmatprep.subr.mxu0 0.0
    %1794 = vmatpush1.msra.mxu0 0.0
    %1795 = vmatprep.subr.mxu0 0.0
    %1796 = vmatpush1.msra.mxu0 0.0
    %1797 = vmatprep.subr.mxu0 0.0
    %1798 = vmatpush1.msra.mxu0 0.0
    %1799 = vmatprep.subr.mxu0 0.0
    %1800 = vmatpush1.msra.mxu0 0.0
    %1801 = vmatprep.subr.mxu0 0.0
    %1802 = vmatpush1.msra.mxu0 0.0
    %1803 = vmatprep.subr.mxu0 0.0
    %1804 = vmatpush1.msra.mxu0 0.0
    %1805 = vmatprep.subr.mxu0 0.0
    %1806 = vmatpush1.msra.mxu0 0.0
    %1807 = vmatprep.subr.mxu0 0.0
    %1808 = vmatpush1.msra.mxu0 0.0
    %1809 = vmatprep.subr.mxu0 0.0
    %1810 = vmatpush1.msra.mxu0 0.0
    %1811 = vmatprep.subr.mxu0 0.0
    %1812 = vmatpush1.msra.mxu0 0.0
    %1813 = vmatprep.subr.mxu0 0.0
    %1814 = vmatpush1.msra.mxu0 0.0
    %1815 = vmatprep.subr.mxu0 0.0
    %1816 = vmatpush1.msra.mxu0 0.0
    %1817 = vmatprep.subr.mxu0 0.0
    %1818 = vmatpush1.msra.mxu0 0.0
    %1819 = vmatprep.subr.mxu0 0.0
    %1820 = vmatpush1.msra.mxu0 0.0
    %1821 = vmatprep.subr.mxu0 0.0
    %1822 = vmatpush1.msra.mxu0 0.0
    %1823 = vmatprep.subr.mxu0 0.0
    %1824 = vmatpush1.msra.mxu0 0.0
    %1825 = vmatprep.subr.mxu0 0.0
    %1826 = vmatpush1.msra.mxu0 0.0
    %1827 = vmatprep.subr.mxu0 0.0
    %1828 = vmatpush1.msra.mxu0 0.0
    %1829 = vmatprep.subr.mxu0 0.0
    %1830 = vmatpush1.msra.mxu0 0.0
    %1831 = vmatprep.subr.mxu0 0.0
    %1832 = vmatpush1.msra.mxu0 0.0
    %1833 = vmatprep.subr.mxu0 0.0
    %1834 = vmatpush1.msra.mxu0 0.0
    %1835 = vmatprep.subr.mxu0 0.0
    %1836 = vmatpush1.msra.mxu0 0.0
    %1837 = vmatprep.subr.mxu0 0.0
    %1838 = vmatpush1.msra.mxu0 0.0
    %1839 = vmatprep.subr.mxu0 0.0
    %1840 = vmatpush1.msra.mxu0 0.0
    %1841 = vmatprep.subr.mxu0 0.0
    %1842 = vmatpush1.msra.mxu0 0.0
    %1843 = vmatprep.subr.mxu0 0.0
    %1844 = vmatpush1.msra.mxu0 0.0
    %1845 = vmatprep.mubr.f32.mxu0 0.0
    %1846 = vmatmul.mubr.f32.gmra.mrb[0].mxu0 %v1776
    %v1847 = vpop.f32.mrb[0].mxu0
    %v1848 = vadd.f32 0.0, %v1847
    %v1849 = vpop.f32.mrb[0].mxu0
    %1850 = vmatprep.mubr.f32.mxu0 0.0
    %1851 = vmatmul.mubr.f32.gmra.mrb[0].mxu0 %v1779
    %v1852 = vpop.f32.mrb[0].mxu0
    %v1853 = vadd.f32 0.0, %v1852
    %v1854 = vpop.f32.mrb[0].mxu0
    %1855 = vdwg.mxu0
    %v1856 = vld [vmem:[#allocation7] sm:$0xff]
    %v1857 = vld [vmem:[#allocation7 + $0x8] sm:$0xff]
    %v1858 = vld [vmem:[#allocation7 + $0x10] sm:$0xff]
    %v1859 = vld [vmem:[#allocation7 + $0x18] sm:$0xff]
    %v1861 = vsel %vm290, %v1239, 0
    %v1864 = vsel %vm290, %v1244, 0
    %v1867 = vsel %vm290, %v1326, 0
    %v1870 = vsel %vm290, %v1331, 0
    %1872 = vmatprep.subr.mxu0 0.0
    %1873 = vmatpush1.msra.mxu0 %v1856
    %1874 = vmatprep.subr.mxu0 0.0
    %1875 = vmatpush1.msra.mxu0 0.0
    %1876 = vmatprep.subr.mxu0 0.0
    %1877 = vmatpush1.msra.mxu0 0.0
    %1878 = vmatprep.subr.mxu0 0.0
    %1879 = vmatpush1.msra.mxu0 0.0
    %1880 = vmatprep.subr.mxu0 0.0
    %1881 = vmatpush1.msra.mxu0 0.0
    %1882 = vmatprep.subr.mxu0 0.0
    %1883 = vmatpush1.msra.mxu0 0.0
    %1884 = vmatprep.subr.mxu0 0.0
    %1885 = vmatpush1.msra.mxu0 0.0
    %1886 = vmatprep.subr.mxu0 0.0
    %1887 = vmatpush1.msra.mxu0 0.0
    %1888 = vmatprep.subr.mxu0 0.0
    %1889 = vmatpush1.msra.mxu0 0.0
    %1890 = vmatprep.subr.mxu0 0.0
    %1891 = vmatpush1.msra.mxu0 0.0
    %1892 = vmatprep.subr.mxu0 0.0
    %1893 = vmatpush1.msra.mxu0 0.0
    %1894 = vmatprep.subr.mxu0 0.0
    %1895 = vmatpush1.msra.mxu0 0.0
    %1896 = vmatprep.subr.mxu0 0.0
    %1897 = vmatpush1.msra.mxu0 0.0
    %1898 = vmatprep.subr.mxu0 0.0
    %1899 = vmatpush1.msra.mxu0 0.0
    %1900 = vmatprep.subr.mxu0 0.0
    %1901 = vmatpush1.msra.mxu0 0.0
    %1902 = vmatprep.subr.mxu0 0.0
    %1903 = vmatpush1.msra.mxu0 0.0
    %1904 = vmatprep.subr.mxu0 0.0
    %1905 = vmatpush1.msra.mxu0 0.0
    %1906 = vmatprep.subr.mxu0 0.0
    %1907 = vmatpush1.msra.mxu0 0.0
    %1908 = vmatprep.subr.mxu0 0.0
    %1909 = vmatpush1.msra.mxu0 0.0
    %1910 = vmatprep.subr.mxu0 0.0
    %1911 = vmatpush1.msra.mxu0 0.0
    %1912 = vmatprep.subr.mxu0 0.0
    %1913 = vmatpush1.msra.mxu0 0.0
    %1914 = vmatprep.subr.mxu0 0.0
    %1915 = vmatpush1.msra.mxu0 0.0
    %1916 = vmatprep.subr.mxu0 0.0
    %1917 = vmatpush1.msra.mxu0 0.0
    %1918 = vmatprep.subr.mxu0 0.0
    %1919 = vmatpush1.msra.mxu0 0.0
    %1920 = vmatprep.subr.mxu0 0.0
    %1921 = vmatpush1.msra.mxu0 0.0
    %1922 = vmatprep.subr.mxu0 0.0
    %1923 = vmatpush1.msra.mxu0 0.0
    %1924 = vmatprep.subr.mxu0 0.0
    %1925 = vmatpush1.msra.mxu0 0.0
    %1926 = vmatprep.subr.mxu0 0.0
    %1927 = vmatpush1.msra.mxu0 0.0
    %1928 = vmatprep.subr.mxu0 0.0
    %1929 = vmatpush1.msra.mxu0 0.0
    %1930 = vmatprep.subr.mxu0 0.0
    %1931 = vmatpush1.msra.mxu0 0.0
    %1932 = vmatprep.subr.mxu0 0.0
    %1933 = vmatpush1.msra.mxu0 0.0
    %1934 = vmatprep.subr.mxu0 0.0
    %1935 = vmatpush1.msra.mxu0 0.0
    %1936 = vmatprep.mubr.f32.mxu0 0.0
    %1937 = vmatmul.mubr.f32.gmra.mrb[0].mxu0 %v1861
    %v1938 = vpop.f32.mrb[0].mxu0
    %v1939 = vadd.f32 0.0, %v1938
    %v1940 = vpop.f32.mrb[0].mxu0
    %1941 = vmatprep.mubr.f32.mxu0 0.0
    %1942 = vmatmul.mubr.f32.gmra.mrb[0].mxu0 %v1864
    %v1943 = vpop.f32.mrb[0].mxu0
    %v1944 = vadd.f32 0.0, %v1943
    %v1945 = vpop.f32.mrb[0].mxu0
    %1946 = vmatprep.mubr.f32.mxu0 0.0
    %1947 = vmatmul.mubr.f32.gmra.mrb[0].mxu0 %v1867
    %v1948 = vpop.f32.mrb[0].mxu0
    %v1949 = vadd.f32 0.0, %v1948
    %v1950 = vpop.f32.mrb[0].mxu0
    %1951 = vmatprep.mubr.f32.mxu0 0.0
    %1952 = vmatmul.mubr.f32.gmra.mrb[0].mxu0 %v1870
    %v1953 = vpop.f32.mrb[0].mxu0
    %v1954 = vadd.f32 0.0, %v1953
    %v1955 = vpop.f32.mrb[0].mxu0
    %1956 = vdwg.mxu0
    %v1958 = vsel %vm290, %v1413, 0
    %v1961 = vsel %vm290, %v1418, 0
    %v1964 = vsel %vm290, %v1500, 0
    %v1967 = vsel %vm290, %v1505, 0
    %1969 = vmatprep.subr.mxu0 0.0
    %1970 = vmatpush1.msra.mxu0 %v1857
    %1971 = vmatprep.subr.mxu0 0.0
    %1972 = vmatpush1.msra.mxu0 0.0
    %1973 = vmatprep.subr.mxu0 0.0
    %1974 = vmatpush1.msra.mxu0 0.0
    %1975 = vmatprep.subr.mxu0 0.0
    %1976 = vmatpush1.msra.mxu0 0.0
    %1977 = vmatprep.subr.mxu0 0.0
    %1978 = vmatpush1.msra.mxu0 0.0
    %1979 = vmatprep.subr.mxu0 0.0
    %1980 = vmatpush1.msra.mxu0 0.0
    %1981 = vmatprep.subr.mxu0 0.0
    %1982 = vmatpush1.msra.mxu0 0.0
    %1983 = vmatprep.subr.mxu0 0.0
    %1984 = vmatpush1.msra.mxu0 0.0
    %1985 = vmatprep.subr.mxu0 0.0
    %1986 = vmatpush1.msra.mxu0 0.0
    %1987 = vmatprep.subr.mxu0 0.0
    %1988 = vmatpush1.msra.mxu0 0.0
    %1989 = vmatprep.subr.mxu0 0.0
    %1990 = vmatpush1.msra.mxu0 0.0
    %1991 = vmatprep.subr.mxu0 0.0
    %1992 = vmatpush1.msra.mxu0 0.0
    %1993 = vmatprep.subr.mxu0 0.0
    %1994 = vmatpush1.msra.mxu0 0.0
    %1995 = vmatprep.subr.mxu0 0.0
    %1996 = vmatpush1.msra.mxu0 0.0
    %1997 = vmatprep.subr.mxu0 0.0
    %1998 = vmatpush1.msra.mxu0 0.0
    %1999 = vmatprep.subr.mxu0 0.0
    %2000 = vmatpush1.msra.mxu0 0.0
    %2001 = vmatprep.subr.mxu0 0.0
    %2002 = vmatpush1.msra.mxu0 0.0
    %2003 = vmatprep.subr.mxu0 0.0
    %2004 = vmatpush1.msra.mxu0 0.0
    %2005 = vmatprep.subr.mxu0 0.0
    %2006 = vmatpush1.msra.mxu0 0.0
    %2007 = vmatprep.subr.mxu0 0.0
    %2008 = vmatpush1.msra.mxu0 0.0
    %2009 = vmatprep.subr.mxu0 0.0
    %2010 = vmatpush1.msra.mxu0 0.0
    %2011 = vmatprep.subr.mxu0 0.0
    %2012 = vmatpush1.msra.mxu0 0.0
    %2013 = vmatprep.subr.mxu0 0.0
    %2014 = vmatpush1.msra.mxu0 0.0
    %2015 = vmatprep.subr.mxu0 0.0
    %2016 = vmatpush1.msra.mxu0 0.0
    %2017 = vmatprep.subr.mxu0 0.0
    %2018 = vmatpush1.msra.mxu0 0.0
    %2019 = vmatprep.subr.mxu0 0.0
    %2020 = vmatpush1.msra.mxu0 0.0
    %2021 = vmatprep.subr.mxu0 0.0
    %2022 = vmatpush1.msra.mxu0 0.0
    %2023 = vmatprep.subr.mxu0 0.0
    %2024 = vmatpush1.msra.mxu0 0.0
    %2025 = vmatprep.subr.mxu0 0.0
    %2026 = vmatpush1.msra.mxu0 0.0
    %2027 = vmatprep.subr.mxu0 0.0
    %2028 = vmatpush1.msra.mxu0 0.0
    %2029 = vmatprep.subr.mxu0 0.0
    %2030 = vmatpush1.msra.mxu0 0.0
    %2031 = vmatprep.subr.mxu0 0.0
    %2032 = vmatpush1.msra.mxu0 0.0
    %2033 = vmatprep.mubr.f32.mxu0 0.0
    %2034 = vmatmul.mubr.f32.gmra.mrb[0].mxu0 %v1958
    %v2035 = vpop.f32.mrb[0].mxu0
    %v2036 = vadd.f32 0.0, %v2035
    %v2037 = vpop.f32.mrb[0].mxu0
    %2038 = vmatprep.mubr.f32.mxu0 0.0
    %2039 = vmatmul.mubr.f32.gmra.mrb[0].mxu0 %v1961
    %v2040 = vpop.f32.mrb[0].mxu0
    %v2041 = vadd.f32 0.0, %v2040
    %v2042 = vpop.f32.mrb[0].mxu0
    %2043 = vmatprep.mubr.f32.mxu0 0.0
    %2044 = vmatmul.mubr.f32.gmra.mrb[0].mxu0 %v1964
    %v2045 = vpop.f32.mrb[0].mxu0
    %v2046 = vadd.f32 0.0, %v2045
    %v2047 = vpop.f32.mrb[0].mxu0
    %2048 = vmatprep.mubr.f32.mxu0 0.0
    %2049 = vmatmul.mubr.f32.gmra.mrb[0].mxu0 %v1967
    %v2050 = vpop.f32.mrb[0].mxu0
    %v2051 = vadd.f32 0.0, %v2050
    %v2052 = vpop.f32.mrb[0].mxu0
    %2053 = vdwg.mxu0
    %v2055 = vsel %vm290, %v1587, 0
    %v2058 = vsel %vm290, %v1592, 0
    %v2061 = vsel %vm290, %v1674, 0
    %v2064 = vsel %vm290, %v1679, 0
    %2066 = vmatprep.subr.mxu0 0.0
    %2067 = vmatpush1.msra.mxu0 %v1858
    %2068 = vmatprep.subr.mxu0 0.0
    %2069 = vmatpush1.msra.mxu0 0.0
    %2070 = vmatprep.subr.mxu0 0.0
    %2071 = vmatpush1.msra.mxu0 0.0
    %2072 = vmatprep.subr.mxu0 0.0
    %2073 = vmatpush1.msra.mxu0 0.0
    %2074 = vmatprep.subr.mxu0 0.0
    %2075 = vmatpush1.msra.mxu0 0.0
    %2076 = vmatprep.subr.mxu0 0.0
    %2077 = vmatpush1.msra.mxu0 0.0
    %2078 = vmatprep.subr.mxu0 0.0
    %2079 = vmatpush1.msra.mxu0 0.0
    %2080 = vmatprep.subr.mxu0 0.0
    %2081 = vmatpush1.msra.mxu0 0.0
    %2082 = vmatprep.subr.mxu0 0.0
    %2083 = vmatpush1.msra.mxu0 0.0
    %2084 = vmatprep.subr.mxu0 0.0
    %2085 = vmatpush1.msra.mxu0 0.0
    %2086 = vmatprep.subr.mxu0 0.0
    %2087 = vmatpush1.msra.mxu0 0.0
    %2088 = vmatprep.subr.mxu0 0.0
    %2089 = vmatpush1.msra.mxu0 0.0
    %2090 = vmatprep.subr.mxu0 0.0
    %2091 = vmatpush1.msra.mxu0 0.0
    %2092 = vmatprep.subr.mxu0 0.0
    %2093 = vmatpush1.msra.mxu0 0.0
    %2094 = vmatprep.subr.mxu0 0.0
    %2095 = vmatpush1.msra.mxu0 0.0
    %2096 = vmatprep.subr.mxu0 0.0
    %2097 = vmatpush1.msra.mxu0 0.0
    %2098 = vmatprep.subr.mxu0 0.0
    %2099 = vmatpush1.msra.mxu0 0.0
    %2100 = vmatprep.subr.mxu0 0.0
    %2101 = vmatpush1.msra.mxu0 0.0
    %2102 = vmatprep.subr.mxu0 0.0
    %2103 = vmatpush1.msra.mxu0 0.0
    %2104 = vmatprep.subr.mxu0 0.0
    %2105 = vmatpush1.msra.mxu0 0.0
    %2106 = vmatprep.subr.mxu0 0.0
    %2107 = vmatpush1.msra.mxu0 0.0
    %2108 = vmatprep.subr.mxu0 0.0
    %2109 = vmatpush1.msra.mxu0 0.0
    %2110 = vmatprep.subr.mxu0 0.0
    %2111 = vmatpush1.msra.mxu0 0.0
    %2112 = vmatprep.subr.mxu0 0.0
    %2113 = vmatpush1.msra.mxu0 0.0
    %2114 = vmatprep.subr.mxu0 0.0
    %2115 = vmatpush1.msra.mxu0 0.0
    %2116 = vmatprep.subr.mxu0 0.0
    %2117 = vmatpush1.msra.mxu0 0.0
    %2118 = vmatprep.subr.mxu0 0.0
    %2119 = vmatpush1.msra.mxu0 0.0
    %2120 = vmatprep.subr.mxu0 0.0
    %2121 = vmatpush1.msra.mxu0 0.0
    %2122 = vmatprep.subr.mxu0 0.0
    %2123 = vmatpush1.msra.mxu0 0.0
    %2124 = vmatprep.subr.mxu0 0.0
    %2125 = vmatpush1.msra.mxu0 0.0
    %2126 = vmatprep.subr.mxu0 0.0
    %2127 = vmatpush1.msra.mxu0 0.0
    %2128 = vmatprep.subr.mxu0 0.0
    %2129 = vmatpush1.msra.mxu0 0.0
    %2130 = vmatprep.mubr.f32.mxu0 0.0
    %2131 = vmatmul.mubr.f32.gmra.mrb[0].mxu0 %v2055
    %v2132 = vpop.f32.mrb[0].mxu0
    %v2133 = vadd.f32 0.0, %v2132
    %v2134 = vpop.f32.mrb[0].mxu0
    %2135 = vmatprep.mubr.f32.mxu0 0.0
    %2136 = vmatmul.mubr.f32.gmra.mrb[0].mxu0 %v2058
    %v2137 = vpop.f32.mrb[0].mxu0
    %v2138 = vadd.f32 0.0, %v2137
    %v2139 = vpop.f32.mrb[0].mxu0
    %2140 = vmatprep.mubr.f32.mxu0 0.0
    %2141 = vmatmul.mubr.f32.gmra.mrb[0].mxu0 %v2061
    %v2142 = vpop.f32.mrb[0].mxu0
    %v2143 = vadd.f32 0.0, %v2142
    %v2144 = vpop.f32.mrb[0].mxu0
    %2145 = vmatprep.mubr.f32.mxu0 0.0
    %2146 = vmatmul.mubr.f32.gmra.mrb[0].mxu0 %v2064
    %v2147 = vpop.f32.mrb[0].mxu0
    %v2148 = vadd.f32 0.0, %v2147
    %v2149 = vpop.f32.mrb[0].mxu0
    %2150 = vdwg.mxu0
    %v2152 = vsel %vm290, %v1761, 0
    %v2155 = vsel %vm290, %v1766, 0
    %v2158 = vsel %vm290, %v1848, 0
    %v2161 = vsel %vm290, %v1853, 0
    %2163 = vmatprep.subr.mxu0 0.0
    %2164 = vmatpush1.msra.mxu0 %v1859
    %2165 = vmatprep.subr.mxu0 0.0
    %2166 = vmatpush1.msra.mxu0 0.0
    %2167 = vmatprep.subr.mxu0 0.0
    %2168 = vmatpush1.msra.mxu0 0.0
    %2169 = vmatprep.subr.mxu0 0.0
    %2170 = vmatpush1.msra.mxu0 0.0
    %2171 = vmatprep.subr.mxu0 0.0
    %2172 = vmatpush1.msra.mxu0 0.0
    %2173 = vmatprep.subr.mxu0 0.0
    %2174 = vmatpush1.msra.mxu0 0.0
    %2175 = vmatprep.subr.mxu0 0.0
    %2176 = vmatpush1.msra.mxu0 0.0
    %2177 = vmatprep.subr.mxu0 0.0
    %2178 = vmatpush1.msra.mxu0 0.0
    %2179 = vmatprep.subr.mxu0 0.0
    %2180 = vmatpush1.msra.mxu0 0.0
    %2181 = vmatprep.subr.mxu0 0.0
    %2182 = vmatpush1.msra.mxu0 0.0
    %2183 = vmatprep.subr.mxu0 0.0
    %2184 = vmatpush1.msra.mxu0 0.0
    %2185 = vmatprep.subr.mxu0 0.0
    %2186 = vmatpush1.msra.mxu0 0.0
    %2187 = vmatprep.subr.mxu0 0.0
    %2188 = vmatpush1.msra.mxu0 0.0
    %2189 = vmatprep.subr.mxu0 0.0
    %2190 = vmatpush1.msra.mxu0 0.0
    %2191 = vmatprep.subr.mxu0 0.0
    %2192 = vmatpush1.msra.mxu0 0.0
    %2193 = vmatprep.subr.mxu0 0.0
    %2194 = vmatpush1.msra.mxu0 0.0
    %2195 = vmatprep.subr.mxu0 0.0
    %2196 = vmatpush1.msra.mxu0 0.0
    %2197 = vmatprep.subr.mxu0 0.0
    %2198 = vmatpush1.msra.mxu0 0.0
    %2199 = vmatprep.subr.mxu0 0.0
    %2200 = vmatpush1.msra.mxu0 0.0
    %2201 = vmatprep.subr.mxu0 0.0
    %2202 = vmatpush1.msra.mxu0 0.0
    %2203 = vmatprep.subr.mxu0 0.0
    %2204 = vmatpush1.msra.mxu0 0.0
    %2205 = vmatprep.subr.mxu0 0.0
    %2206 = vmatpush1.msra.mxu0 0.0
    %2207 = vmatprep.subr.mxu0 0.0
    %2208 = vmatpush1.msra.mxu0 0.0
    %2209 = vmatprep.subr.mxu0 0.0
    %2210 = vmatpush1.msra.mxu0 0.0
    %2211 = vmatprep.subr.mxu0 0.0
    %2212 = vmatpush1.msra.mxu0 0.0
    %2213 = vmatprep.subr.mxu0 0.0
    %2214 = vmatpush1.msra.mxu0 0.0
    %2215 = vmatprep.subr.mxu0 0.0
    %2216 = vmatpush1.msra.mxu0 0.0
    %2217 = vmatprep.subr.mxu0 0.0
    %2218 = vmatpush1.msra.mxu0 0.0
    %2219 = vmatprep.subr.mxu0 0.0
    %2220 = vmatpush1.msra.mxu0 0.0
    %2221 = vmatprep.subr.mxu0 0.0
    %2222 = vmatpush1.msra.mxu0 0.0
    %2223 = vmatprep.subr.mxu0 0.0
    %2224 = vmatpush1.msra.mxu0 0.0
    %2225 = vmatprep.subr.mxu0 0.0
    %2226 = vmatpush1.msra.mxu0 0.0
    %2227 = vmatprep.mubr.f32.mxu0 0.0
    %2228 = vmatmul.mubr.f32.gmra.mrb[0].mxu0 %v2152
    %v2229 = vpop.f32.mrb[0].mxu0
    %v2230 = vadd.f32 0.0, %v2229
    %v2231 = vpop.f32.mrb[0].mxu0
    %2232 = vmatprep.mubr.f32.mxu0 0.0
    %2233 = vmatmul.mubr.f32.gmra.mrb[0].mxu0 %v2155
    %v2234 = vpop.f32.mrb[0].mxu0
    %v2235 = vadd.f32 0.0, %v2234
    %v2236 = vpop.f32.mrb[0].mxu0
    %2237 = vmatprep.mubr.f32.mxu0 0.0
    %2238 = vmatmul.mubr.f32.gmra.mrb[0].mxu0 %v2158
    %v2239 = vpop.f32.mrb[0].mxu0
    %v2240 = vadd.f32 0.0, %v2239
    %v2241 = vpop.f32.mrb[0].mxu0
    %2242 = vmatprep.mubr.f32.mxu0 0.0
    %2243 = vmatmul.mubr.f32.gmra.mrb[0].mxu0 %v2161
    %v2244 = vpop.f32.mrb[0].mxu0
    %v2245 = vadd.f32 0.0, %v2244
    %v2246 = vpop.f32.mrb[0].mxu0
    %2247 = vdwg.mxu0
    %v2248 = vsel %vm87, %v1939, 0.0
    %v2249 = vsel %vm87, %v2036, 0.0
    %v2250 = vadd.f32 %v2248, %v2249
    %v2251 = vsel %vm87, %v2133, 0.0
    %v2252 = vadd.f32 %v2250, %v2251
    %v2253 = vsel %vm87, %v2230, 0.0
    %v2254 = vadd.f32 %v2252, %v2253
    %v2255 = vsel %vm87, %v1944, 0.0
    %v2256 = vsel %vm87, %v2041, 0.0
    %v2257 = vadd.f32 %v2255, %v2256
    %v2258 = vsel %vm87, %v2138, 0.0
    %v2259 = vadd.f32 %v2257, %v2258
    %v2260 = vsel %vm87, %v2235, 0.0
    %v2261 = vadd.f32 %v2259, %v2260
    %v2262 = vsel %vm87, %v1949, 0.0
    %v2263 = vsel %vm87, %v2046, 0.0
    %v2264 = vadd.f32 %v2262, %v2263
    %v2265 = vsel %vm87, %v2143, 0.0
    %v2266 = vadd.f32 %v2264, %v2265
    %v2267 = vsel %vm87, %v2240, 0.0
    %v2268 = vadd.f32 %v2266, %v2267
    %v2269 = vsel %vm87, %v1954, 0.0
    %v2270 = vsel %vm87, %v2051, 0.0
    %v2271 = vadd.f32 %v2269, %v2270
    %v2272 = vsel %vm87, %v2148, 0.0
    %v2273 = vadd.f32 %v2271, %v2272
    %v2274 = vsel %vm87, %v2245, 0.0
    %v2275 = vadd.f32 %v2273, %v2274
    %v2276 = vadd.f32 %v83, %v2254
    %v2277 = vadd.f32 %v84, %v2261
    %v2278 = vadd.f32 %v85, %v2268
    %v2279 = vadd.f32 %v86, %v2275
    %v2280 = vlaneseq
    %v2281 = vshrl.u32 %v2280, 7
    %v2282 = vsub.s32 0, %v2281
    %v2283 = vrot.slane %v80, %v2282
    %v2284 = vadd.f32 %v2276, %v2283
    %v2285 = vadd.f32 %v2277, %v2283
    %v2286 = vadd.f32 %v2278, %v2283
    %v2287 = vadd.f32 %v2279, %v2283
    %v2288 = vsel %vm87, %v2284, 0.0
    %2289 = vadd.xlane.f32.xlu0 %v2288
    %v2290 = vpop.xlane.xlu0 %2289
    %v2291 = vsel %vm87, %v2285, 0.0
    %2292 = vadd.xlane.f32.xlu0 %v2291
    %v2293 = vpop.xlane.xlu0 %2292
    %v2294 = vsel %vm87, %v2286, 0.0
    %2295 = vadd.xlane.f32.xlu0 %v2294
    %v2296 = vpop.xlane.xlu0 %2295
    %v2297 = vsel %vm87, %v2287, 0.0
    %2298 = vadd.xlane.f32.xlu0 %v2297
    %v2299 = vpop.xlane.xlu0 %2298
    %v2300 = vmul.f32 %v2290, %v100
    %v2301 = vmul.f32 %v2293, %v100
    %v2302 = vmul.f32 %v2296, %v100
    %v2303 = vmul.f32 %v2299, %v100
    %v2304 = vsub.f32 %v2284, %v2300
    %v2305 = vsub.f32 %v2285, %v2301
    %v2306 = vsub.f32 %v2286, %v2302
    %v2307 = vsub.f32 %v2287, %v2303
    %v2308 = vmul.f32 %v2304, %v2304
    %v2309 = vmul.f32 %v2305, %v2305
    %v2310 = vmul.f32 %v2306, %v2306
    %v2311 = vmul.f32 %v2307, %v2307
    %v2312 = vsel %vm87, %v2308, 0.0
    %2313 = vadd.xlane.f32.xlu0 %v2312
    %v2314 = vpop.xlane.xlu0 %2313
    %v2315 = vsel %vm87, %v2309, 0.0
    %2316 = vadd.xlane.f32.xlu0 %v2315
    %v2317 = vpop.xlane.xlu0 %2316
    %v2318 = vsel %vm87, %v2310, 0.0
    %2319 = vadd.xlane.f32.xlu0 %v2318
    %v2320 = vpop.xlane.xlu0 %2319
    %v2321 = vsel %vm87, %v2311, 0.0
    %2322 = vadd.xlane.f32.xlu0 %v2321
    %v2323 = vpop.xlane.xlu0 %2322
    %v2324 = vmul.f32 %v2314, %v100
    %v2325 = vmul.f32 %v2317, %v100
    %v2326 = vmul.f32 %v2320, %v100
    %v2327 = vmul.f32 %v2323, %v100
    %v2328 = vadd.f32 %v2324, 1e-05
    %v2329 = vadd.f32 %v2325, 1e-05
    %v2330 = vadd.f32 %v2326, 1e-05
    %v2331 = vadd.f32 %v2327, 1e-05
    %v2332 = vrsqrt.pop %v2328
    %v2333 = vrsqrt.pop %v2329
    %v2334 = vrsqrt.pop %v2330
    %v2335 = vrsqrt.pop %v2331
    %v2336 = vmul.f32 %v2304, %v2332
    %v2337 = vmul.f32 %v2305, %v2333
    %v2338 = vmul.f32 %v2306, %v2334
    %v2339 = vmul.f32 %v2307, %v2335
    %v2340 = vlaneseq
    %v2341 = vshrl.u32 %v2340, 7
    %v2342 = vsub.s32 0, %v2341
    %v2343 = vrot.slane %v78, %v2342
    %v2344 = vmul.f32 %v2336, %v2343
    %v2345 = vmul.f32 %v2337, %v2343
    %v2346 = vmul.f32 %v2338, %v2343
    %v2347 = vmul.f32 %v2339, %v2343
    %v2348 = vlaneseq
    %v2349 = vshrl.u32 %v2348, 7
    %v2350 = vsub.s32 0, %v2349
    %v2351 = vrot.slane %v79, %v2350
    %v2352 = vadd.f32 %v2344, %v2351
    %v2353 = vadd.f32 %v2345, %v2351
    %v2354 = vadd.f32 %v2346, %v2351
    %v2355 = vadd.f32 %v2347, %v2351
    %v2356 = vld [vmem:[#allocation8] sm:$0xff]
    %v2357 = vld [vmem:[#allocation8 + $0x8] sm:$0xff]
    %v2358 = vld [vmem:[#allocation8 + $0x10] sm:$0xff]
    %v2359 = vld [vmem:[#allocation8 + $0x18] sm:$0xff]
    %s2360 = scalar_lea.vmem [#allocation8], 32
    %v2361 = vld [vmem:[%s2360] sm:$0xff]
    %v2362 = vld [vmem:[%s2360 + $0x8] sm:$0xff]
    %v2363 = vld [vmem:[%s2360 + $0x10] sm:$0xff]
    %v2364 = vld [vmem:[%s2360 + $0x18] sm:$0xff]
    %v2365 = vlaneseq
    %v2366 = vshrl.u32 %v2365, 7
    %v2367 = vsub.s32 0, %v2366
    %v2368 = vrot.slane %v82, %v2367
    %v2370 = vsel %vm87, %v2352, 0
    %v2373 = vsel %vm87, %v2353, 0
    %v2376 = vsel %vm87, %v2354, 0
    %v2379 = vsel %vm87, %v2355, 0
    %2381 = vmatprep.subr.mxu0 0.0
    %2382 = vmatpush1.msra.mxu0 %v2356
    %2383 = vmatprep.subr.mxu0 0.0
    %2384 = vmatpush1.msra.mxu0 %v2357
    %2385 = vmatprep.subr.mxu0 0.0
    %2386 = vmatpush1.msra.mxu0 %v2358
    %2387 = vmatprep.subr.mxu0 0.0
    %2388 = vmatpush1.msra.mxu0 %v2359
    %2389 = vmatprep.subr.mxu0 0.0
    %2390 = vmatpush1.msra.mxu0 0.0
    %2391 = vmatprep.subr.mxu0 0.0
    %2392 = vmatpush1.msra.mxu0 0.0
    %2393 = vmatprep.subr.mxu0 0.0
    %2394 = vmatpush1.msra.mxu0 0.0
    %2395 = vmatprep.subr.mxu0 0.0
    %2396 = vmatpush1.msra.mxu0 0.0
    %2397 = vmatprep.subr.mxu0 0.0
    %2398 = vmatpush1.msra.mxu0 0.0
    %2399 = vmatprep.subr.mxu0 0.0
    %2400 = vmatpush1.msra.mxu0 0.0
    %2401 = vmatprep.subr.mxu0 0.0
    %2402 = vmatpush1.msra.mxu0 0.0
    %2403 = vmatprep.subr.mxu0 0.0
    %2404 = vmatpush1.msra.mxu0 0.0
    %2405 = vmatprep.subr.mxu0 0.0
    %2406 = vmatpush1.msra.mxu0 0.0
    %2407 = vmatprep.subr.mxu0 0.0
    %2408 = vmatpush1.msra.mxu0 0.0
    %2409 = vmatprep.subr.mxu0 0.0
    %2410 = vmatpush1.msra.mxu0 0.0
    %2411 = vmatprep.subr.mxu0 0.0
    %2412 = vmatpush1.msra.mxu0 0.0
    %2413 = vmatprep.subr.mxu0 0.0
    %2414 = vmatpush1.msra.mxu0 0.0
    %2415 = vmatprep.subr.mxu0 0.0
    %2416 = vmatpush1.msra.mxu0 0.0
    %2417 = vmatprep.subr.mxu0 0.0
    %2418 = vmatpush1.msra.mxu0 0.0
    %2419 = vmatprep.subr.mxu0 0.0
    %2420 = vmatpush1.msra.mxu0 0.0
    %2421 = vmatprep.subr.mxu0 0.0
    %2422 = vmatpush1.msra.mxu0 0.0
    %2423 = vmatprep.subr.mxu0 0.0
    %2424 = vmatpush1.msra.mxu0 0.0
    %2425 = vmatprep.subr.mxu0 0.0
    %2426 = vmatpush1.msra.mxu0 0.0
    %2427 = vmatprep.subr.mxu0 0.0
    %2428 = vmatpush1.msra.mxu0 0.0
    %2429 = vmatprep.subr.mxu0 0.0
    %2430 = vmatpush1.msra.mxu0 0.0
    %2431 = vmatprep.subr.mxu0 0.0
    %2432 = vmatpush1.msra.mxu0 0.0
    %2433 = vmatprep.subr.mxu0 0.0
    %2434 = vmatpush1.msra.mxu0 0.0
    %2435 = vmatprep.subr.mxu0 0.0
    %2436 = vmatpush1.msra.mxu0 0.0
    %2437 = vmatprep.subr.mxu0 0.0
    %2438 = vmatpush1.msra.mxu0 0.0
    %2439 = vmatprep.subr.mxu0 0.0
    %2440 = vmatpush1.msra.mxu0 0.0
    %2441 = vmatprep.subr.mxu0 0.0
    %2442 = vmatpush1.msra.mxu0 0.0
    %2443 = vmatprep.subr.mxu0 0.0
    %2444 = vmatpush1.msra.mxu0 0.0
    %2445 = vmatprep.mubr.f32.mxu0 0.0
    %2446 = vmatmul.mubr.f32.gmra.mrb[0].mxu0 %v2370
    %v2447 = vpop.f32.mrb[0].mxu0
    %v2448 = vadd.f32 %v2368, %v2447
    %v2449 = vpop.f32.mrb[0].mxu0
    %2450 = vmatprep.mubr.f32.mxu0 0.0
    %2451 = vmatmul.mubr.f32.gmra.mrb[0].mxu0 %v2373
    %v2452 = vpop.f32.mrb[0].mxu0
    %v2453 = vadd.f32 %v2368, %v2452
    %v2454 = vpop.f32.mrb[0].mxu0
    %2455 = vmatprep.mubr.f32.mxu0 0.0
    %2456 = vmatmul.mubr.f32.gmra.mrb[0].mxu0 %v2376
    %v2457 = vpop.f32.mrb[0].mxu0
    %v2458 = vadd.f32 %v2368, %v2457
    %v2459 = vpop.f32.mrb[0].mxu0
    %2460 = vmatprep.mubr.f32.mxu0 0.0
    %2461 = vmatmul.mubr.f32.gmra.mrb[0].mxu0 %v2379
    %v2462 = vpop.f32.mrb[0].mxu0
    %v2463 = vadd.f32 %v2368, %v2462
    %v2464 = vpop.f32.mrb[0].mxu0
    %2465 = vdwg.mxu0
    %v2466 = vmul.f32 %v2448, %v2448
    %v2467 = vmul.f32 %v2453, %v2453
    %v2468 = vmul.f32 %v2458, %v2458
    %v2469 = vmul.f32 %v2463, %v2463
    %v2470 = vmul.f32 %v2448, %v2466
    %v2471 = vmul.f32 %v2453, %v2467
    %v2472 = vmul.f32 %v2458, %v2468
    %v2473 = vmul.f32 %v2463, %v2469
    %v2474 = vmul.f32 %v2470, 0.044715
    %v2475 = vmul.f32 %v2471, 0.044715
    %v2476 = vmul.f32 %v2472, 0.044715
    %v2477 = vmul.f32 %v2473, 0.044715
    %v2478 = vadd.f32 %v2448, %v2474
    %v2479 = vadd.f32 %v2453, %v2475
    %v2480 = vadd.f32 %v2458, %v2476
    %v2481 = vadd.f32 %v2463, %v2477
    %v2482 = vmul.f32 %v2478, 0.7978846
    %v2483 = vmul.f32 %v2479, 0.7978846
    %v2484 = vmul.f32 %v2480, 0.7978846
    %v2485 = vmul.f32 %v2481, 0.7978846
    %v2486 = vtanh.pop %v2482
    %v2487 = vtanh.pop %v2483
    %v2488 = vtanh.pop %v2484
    %v2489 = vtanh.pop %v2485
    %v2490 = vadd.f32 %v2486, 1.0
    %v2491 = vadd.f32 %v2487, 1.0
    %v2492 = vadd.f32 %v2488, 1.0
    %v2493 = vadd.f32 %v2489, 1.0
    %v2494 = vmul.f32 %v2490, 0.5
    %v2495 = vmul.f32 %v2491, 0.5
    %v2496 = vmul.f32 %v2492, 0.5
    %v2497 = vmul.f32 %v2493, 0.5
    %v2498 = vmul.f32 %v2448, %v2494
    %v2499 = vmul.f32 %v2453, %v2495
    %v2500 = vmul.f32 %v2458, %v2496
    %v2501 = vmul.f32 %v2463, %v2497
    %v2502 = vlaneseq
    %v2503 = vshrl.u32 %v2502, 7
    %v2504 = vsub.s32 0, %v2503
    %v2505 = vrot.slane %v81, %v2504
    %2506 = vmatprep.subr.mxu0 0.0
    %2507 = vmatpush1.xpose.msra.mxu0 %v2361
    %2508 = vmatprep.subr.mxu0 0.0
    %2509 = vmatpush1.xpose.msra.mxu0 %v2362
    %2510 = vmatprep.subr.mxu0 0.0
    %2511 = vmatpush1.xpose.msra.mxu0 %v2363
    %2512 = vmatprep.subr.mxu0 0.0
    %2513 = vmatpush1.xpose.msra.mxu0 %v2364
    %2514 = vmatprep.subr.mxu0 0.0
    %2515 = vmatpush1.xpose.msra.mxu0 0.0
    %2516 = vmatprep.subr.mxu0 0.0
    %2517 = vmatpush1.xpose.msra.mxu0 0.0
    %2518 = vmatprep.subr.mxu0 0.0
    %2519 = vmatpush1.xpose.msra.mxu0 0.0
    %2520 = vmatprep.subr.mxu0 0.0
    %2521 = vmatpush1.xpose.msra.mxu0 0.0
    %2522 = vmatprep.subr.mxu0 0.0
    %2523 = vmatpush1.xpose.msra.mxu0 0.0
    %2524 = vmatprep.subr.mxu0 0.0
    %2525 = vmatpush1.xpose.msra.mxu0 0.0
    %2526 = vmatprep.subr.mxu0 0.0
    %2527 = vmatpush1.xpose.msra.mxu0 0.0
    %2528 = vmatprep.subr.mxu0 0.0
    %2529 = vmatpush1.xpose.msra.mxu0 0.0
    %2530 = vmatprep.subr.mxu0 0.0
    %2531 = vmatpush1.xpose.msra.mxu0 0.0
    %2532 = vmatprep.subr.mxu0 0.0
    %2533 = vmatpush1.xpose.msra.mxu0 0.0
    %2534 = vmatprep.subr.mxu0 0.0
    %2535 = vmatpush1.xpose.msra.mxu0 0.0
    %2536 = vmatprep.subr.mxu0 0.0
    %2537 = vmatpush1.xpose.msra.mxu0 0.0
    %2538 = vmatprep.subr.mxu0 0.0
    %2539 = vmatpush1.xpose.msra.mxu0 0.0
    %2540 = vmatprep.subr.mxu0 0.0
    %2541 = vmatpush1.xpose.msra.mxu0 0.0
    %2542 = vmatprep.subr.mxu0 0.0
    %2543 = vmatpush1.xpose.msra.mxu0 0.0
    %2544 = vmatprep.subr.mxu0 0.0
    %2545 = vmatpush1.xpose.msra.mxu0 0.0
    %2546 = vmatprep.subr.mxu0 0.0
    %2547 = vmatpush1.xpose.msra.mxu0 0.0
    %2548 = vmatprep.subr.mxu0 0.0
    %2549 = vmatpush1.xpose.msra.mxu0 0.0
    %2550 = vmatprep.subr.mxu0 0.0
    %2551 = vmatpush1.xpose.msra.mxu0 0.0
    %2552 = vmatprep.subr.mxu0 0.0
    %2553 = vmatpush1.xpose.msra.mxu0 0.0
    %2554 = vmatprep.subr.mxu0 0.0
    %2555 = vmatpush1.xpose.msra.mxu0 0.0
    %2556 = vmatprep.subr.mxu0 0.0
    %2557 = vmatpush1.xpose.msra.mxu0 0.0
    %2558 = vmatprep.subr.mxu0 0.0
    %2559 = vmatpush1.xpose.msra.mxu0 0.0
    %2560 = vmatprep.subr.mxu0 0.0
    %2561 = vmatpush1.xpose.msra.mxu0 0.0
    %2562 = vmatprep.subr.mxu0 0.0
    %2563 = vmatpush1.xpose.msra.mxu0 0.0
    %2564 = vmatprep.subr.mxu0 0.0
    %2565 = vmatpush1.xpose.msra.mxu0 0.0
    %2566 = vmatprep.subr.mxu0 0.0
    %2567 = vmatpush1.xpose.msra.mxu0 0.0
    %2568 = vmatprep.subr.mxu0 0.0
    %2569 = vmatpush1.xpose.msra.mxu0 0.0
    %2570 = vmatprep.mubr.f32.mxu0 0.0
    %2571 = vmatmul.mubr.f32.gmra.mrb[0].mxu0 %v2498
    %v2572 = vpop.f32.mrb[0].mxu0
    %v2573 = vadd.f32 %v2505, %v2572
    %v2574 = vpop.f32.mrb[0].mxu0
    %2575 = vmatprep.mubr.f32.mxu0 0.0
    %2576 = vmatmul.mubr.f32.gmra.mrb[0].mxu0 %v2499
    %v2577 = vpop.f32.mrb[0].mxu0
    %v2578 = vadd.f32 %v2505, %v2577
    %v2579 = vpop.f32.mrb[0].mxu0
    %2580 = vmatprep.mubr.f32.mxu0 0.0
    %2581 = vmatmul.mubr.f32.gmra.mrb[0].mxu0 %v2500
    %v2582 = vpop.f32.mrb[0].mxu0
    %v2583 = vadd.f32 %v2505, %v2582
    %v2584 = vpop.f32.mrb[0].mxu0
    %2585 = vmatprep.mubr.f32.mxu0 0.0
    %2586 = vmatmul.mubr.f32.gmra.mrb[0].mxu0 %v2501
    %v2587 = vpop.f32.mrb[0].mxu0
    %v2588 = vadd.f32 %v2505, %v2587
    %v2589 = vpop.f32.mrb[0].mxu0
    %2590 = vdwg.mxu0
    %v2591 = vadd.f32 %v2284, %v2573
    %v2592 = vadd.f32 %v2285, %v2578
    %v2593 = vadd.f32 %v2286, %v2583
    %v2594 = vadd.f32 %v2287, %v2588
    %2595 = vst.msk [vmem:[#allocation10] sm:$0xff] %vm87, %v2591
    %2596 = vst.msk [vmem:[#allocation10 + $0x8] sm:$0xff] %vm87, %v2592
    %2597 = vst.msk [vmem:[#allocation10 + $0x10] sm:$0xff] %vm87, %v2593
    %2598 = vst.msk [vmem:[#allocation10 + $0x18] sm:$0xff] %vm87, %v2594
    // Predicated region
    $region38: #{tpu_custom_call.1} parent=1 // pred_check
      _
    $region39: #{tpu_custom_call.1} parent=1 // pred_check_branch
      %2600 = sbr.rel (0) target = $region41
    $region40: #{tpu_custom_call.1} parent=1 // pred_region
      %s2602 = ssub.s32 512, 512
      %2603 = vsyncadd [#allocation4], %s2602
      %s2604 = sshll.u32 [#allocation10], 4
      %s2605 = int_to_ptr.vmem [resolvable:$true] %s2604
      %2610 = dma.vmem_to_hbm [thread:$0]  %s2605, 512, %s5, [#allocation4], 128, 128, 8
    $region41: #{tpu_custom_call.1} parent=1 // pred_fallthru
      _
    // Predicated region
    $region42: #{tpu_custom_call.1} parent=1 // pred_check
      _
    $region43: #{tpu_custom_call.1} parent=1 // pred_check_branch
      %2612 = sbr.rel (0) target = $region45
    $region44: #{tpu_custom_call.1} parent=1 // pred_region
      %2613 = dma.done [#allocation4], 512
    $region45: #{tpu_custom_call.1} parent=1 // pred_fallthru
      _
    %2614 = vsyncpa [#allocation3], 1
    %2615 = vsyncpa [#allocation6], 1
    %2616 = vsyncpa [#allocation9], 1
    %2617 = vsyncpa [#allocation4], 1

</llo_original>
